<compile_context>
chip_gen: v5e
topology: v5e:2x2
jax: 0.10.0
libtpu: 0.0.40
codegen_flags: <defaults>
</compile_context>

<pallas_src>
import functools

import jax
import jax.numpy as jnp
from jax.experimental import pallas as pl
from jax.experimental.pallas import tpu as pltpu

HIDDEN = 32      # hidden_size
VOCAB = 24       # output_size
MAX_LENGTH = 10  # max_length


def _fused_decoder_kernel(
    tok_ref,                                     # (T,) int32, SMEM
    emb_ref, hid0_ref, enc_ref,                  # (V,H), (1,H), (L,H)
    we_ref, wh_ref, wca_ref, wih_ref, wo_ref,    # (H,256),(H,256),(H,H),(H,3H),(H,V)
    b_ref,                                       # (5,128) packed biases
    out_ref,                                     # (T,8,128) packed outputs
    eproj_scr,                                   # (T,256) VMEM scratch
):
  f32 = jnp.float32
  H, V, L = HIDDEN, VOCAB, MAX_LENGTH
  T = tok_ref.shape[0]
  dot = functools.partial(jnp.dot, preferred_element_type=f32)

  # ---- prologue: all token-dependent work, hoisted off the recurrence -------
  iota_v = jax.lax.broadcasted_iota(jnp.int32, (1, V), 1)
  onehot = jnp.concatenate(
      [(iota_v == tok_ref[i]).astype(f32) for i in range(T)], axis=0)   # (T,V)
  emb_all = dot(onehot, emb_ref[...])                                   # (T,H)
  eproj_scr[...] = dot(emb_all, we_ref[...])                            # (T,256)

  biases = b_ref[...]                                                   # (5,128)
  attn_b = biases[0:1, :L]
  comb_b = biases[1:2, :H]
  gi_b = biases[2:3, :3 * H]
  gh_b = biases[3:4, :3 * H]
  out_b = biases[4:5, :V]

  enc = enc_ref[...]            # (L, H)
  slab_h = wh_ref[...]          # (H, 256)
  wca = wca_ref[...]            # (H, H)
  wih = wih_ref[...]            # (H, 3H)
  wo = wo_ref[...]              # (H, V)

  # Lane-padding constants built once (JAX does not CSE broadcasts in loops).
  pad_logp = jnp.zeros((1, 128 - V), f32)
  pad_hid = jnp.zeros((1, 128 - H), f32)
  pad_attn = jnp.zeros((1, 128 - L), f32)
  pad_rows = jnp.zeros((5, 128), f32)

  def step(t, hid):
    e_proj = eproj_scr[pl.ds(t, 1), :]                          # (1, 256)
    h_proj = dot(hid, slab_h)                                   # (1, 256)

    # --- attention: Linear(2H -> L) on cat(emb, hid) + softmax --------------
    attn_logits = e_proj[:, :L] + h_proj[:, :L] + attn_b
    m = jnp.max(attn_logits, axis=1, keepdims=True)
    e = jnp.exp(attn_logits - m)
    # exact reciprocal: keeps 1e-4 parity with the reference log-probs
    attn_w = e * pl.reciprocal(jnp.sum(e, axis=1, keepdims=True), approx=False)

    # --- bmm(attn_weights, encoder_outputs) ---------------------------------
    attn_applied = dot(attn_w, enc)                             # (1, H)

    # --- attn_combine(Linear(2H -> H)) + relu (vreg-aligned slice at 128) ---
    comb = e_proj[:, 128:128 + H] + dot(attn_applied, wca) + comb_b
    x = jnp.maximum(comb, 0.0)                                  # GRU input

    # --- one GRU step (PyTorch gate order r, z, n), fused gate matmuls ------
    gi = dot(x, wih) + gi_b                                     # (1, 3H)
    gh = h_proj[:, 128:128 + 3 * H] + gh_b                      # (1, 3H)
    r = jax.nn.sigmoid(gi[:, :H] + gh[:, :H])
    z = jax.nn.sigmoid(gi[:, H:2 * H] + gh[:, H:2 * H])
    n = jnp.tanh(gi[:, 2 * H:] + r * gh[:, 2 * H:])
    h_new = (1.0 - z) * n + z * hid                             # (1, H)

    # --- out(Linear(H -> V)) + log_softmax ----------------------------------
    logits = dot(h_new, wo) + out_b                             # (1, V)
    mo = jnp.max(logits, axis=1, keepdims=True)
    lse = jnp.log(jnp.sum(jnp.exp(logits - mo), axis=1, keepdims=True)) + mo
    logp = logits - lse

    # --- ONE packed (8,128) store: sublane 0=logp, 1=hidden, 2=attn weights -
    tile = jnp.concatenate([
        jnp.concatenate([logp, pad_logp], axis=1),
        jnp.concatenate([h_new, pad_hid], axis=1),
        jnp.concatenate([attn_w, pad_attn], axis=1),
        pad_rows,
    ], axis=0)                                                  # (8, 128)
    out_ref[t] = tile
    return h_new

  jax.lax.fori_loop(0, T, step, hid0_ref[...], unroll=True)


def init_params(key, hidden=HIDDEN, vocab=VOCAB, max_length=MAX_LENGTH):
  ks = jax.random.split(key, 12)
  s = 0.1
  f32 = jnp.float32
  return {
      "embedding": jax.random.normal(ks[0], (vocab, hidden), f32) * s,
      "attn_w": jax.random.normal(ks[1], (max_length, 2 * hidden), f32) * s,
      "attn_b": jax.random.normal(ks[2], (max_length,), f32) * s,
      "comb_w": jax.random.normal(ks[3], (hidden, 2 * hidden), f32) * s,
      "comb_b": jax.random.normal(ks[4], (hidden,), f32) * s,
      "gru_w_ih": jax.random.normal(ks[5], (3 * hidden, hidden), f32) * s,
      "gru_w_hh": jax.random.normal(ks[6], (3 * hidden, hidden), f32) * s,
      "gru_b_ih": jax.random.normal(ks[7], (3 * hidden,), f32) * s,
      "gru_b_hh": jax.random.normal(ks[8], (3 * hidden,), f32) * s,
      "out_w": jax.random.normal(ks[9], (vocab, hidden), f32) * s,
      "out_b": jax.random.normal(ks[10], (vocab,), f32) * s,
  }


def prepare_params(params):
  """One-time weight packing / transposing (kept OFF the per-step hot path)."""
  H, V, L = HIDDEN, VOCAB, MAX_LENGTH
  f32 = jnp.float32
  wa = params["attn_w"].T.astype(f32)            # (2H, L)
  wc = params["comb_w"].T.astype(f32)            # (2H, H)
  wih = params["gru_w_ih"].T.astype(f32)         # (H, 3H), gate order r|z|n
  whh = params["gru_w_hh"].T.astype(f32)         # (H, 3H)
  wout = params["out_w"].T.astype(f32)           # (H, V)

  # Lane-aligned 256-wide slabs: attn segment at lanes [0,L), 2nd at lane 128.
  slab_e = jnp.zeros((H, 256), f32)
  slab_e = slab_e.at[:, :L].set(wa[:H])                # emb -> attn logits
  slab_e = slab_e.at[:, 128:128 + H].set(wc[:H])       # emb -> attn_combine
  slab_h = jnp.zeros((H, 256), f32)
  slab_h = slab_h.at[:, :L].set(wa[H:])                # hid -> attn logits
  slab_h = slab_h.at[:, 128:128 + 3 * H].set(whh)      # hid -> GRU gh (r|z|n)

  biases = jnp.zeros((5, 128), f32)
  biases = biases.at[0, :L].set(params["attn_b"])
  biases = biases.at[1, :H].set(params["comb_b"])
  biases = biases.at[2, :3 * H].set(params["gru_b_ih"])
  biases = biases.at[3, :3 * H].set(params["gru_b_hh"])
  biases = biases.at[4, :V].set(params["out_b"])

  return {
      "emb": params["embedding"].astype(f32),
      "slab_e": slab_e,          # (H, 256)
      "slab_h": slab_h,          # (H, 256)
      "w_ca": wc[H:],            # (H, H)   (times attn_applied)
      "w_ih": wih,               # (H, 3H)  (times x)
      "w_out": wout,             # (H, V)   (times h_new)
      "biases": biases,          # (5, 128)
  }


@jax.jit
def attn_decoder_decode(tokens, hidden0, encoder_outputs, prepared):
  """Run T teacher-forced decoder steps fused inside one Pallas kernel call.

  tokens: (T,) int32; hidden0: (1,1,H) f32; encoder_outputs: (L,H) f32.
  Returns (log_probs (T,V), hiddens (T,H), attn_weights (T,L)).
  """
  H, V, L = HIDDEN, VOCAB, MAX_LENGTH
  T = tokens.shape[0]
  hid0 = hidden0.reshape(1, H).astype(jnp.float32)
  tokens = tokens.astype(jnp.int32)

  inputs = (prepared["emb"], hid0, encoder_outputs.astype(jnp.float32),
            prepared["slab_e"], prepared["slab_h"], prepared["w_ca"],
            prepared["w_ih"], prepared["w_out"], prepared["biases"])

  out = pl.pallas_call(
      _fused_decoder_kernel,
      out_shape=jax.ShapeDtypeStruct((T, 8, 128), jnp.float32),
      in_specs=[pl.BlockSpec(memory_space=pltpu.MemorySpace.SMEM)]
      + [pl.BlockSpec(memory_space=pltpu.MemorySpace.VMEM)] * len(inputs),
      out_specs=pl.BlockSpec(memory_space=pltpu.MemorySpace.VMEM),
      scratch_shapes=[pltpu.VMEM((T, 256), jnp.float32)],
  )(tokens, *inputs)

  return out[:, 0, :V], out[:, 1, :H], out[:, 2, :L]


def attn_decoder_forward(token, hidden, encoder_outputs, prepared):
  """Single decoder step matching AttnDecoderRNN.forward (eval mode)."""
  tokens = jnp.asarray(token, jnp.int32).reshape(1)
  logp, hids, attn_w = attn_decoder_decode(tokens, hidden, encoder_outputs,
                                           prepared)
  return logp, hids.reshape(1, 1, HIDDEN), attn_w


def _reference_forward(token, hidden, encoder_outputs, params):
  """Plain-JAX reference reproducing the PyTorch forward (eval mode)."""
  H = HIDDEN
  emb = params["embedding"][token].reshape(1, H)
  hid = hidden.reshape(1, H)
  cat1 = jnp.concatenate([emb, hid], axis=1)
  attn_logits = cat1 @ params["attn_w"].T + params["attn_b"]
  attn_w = jax.nn.softmax(attn_logits, axis=1)
  attn_applied = attn_w @ encoder_outputs
  cat2 = jnp.concatenate([emb, attn_applied], axis=1)
  x = jax.nn.relu(cat2 @ params["comb_w"].T + params["comb_b"])
  gi = x @ params["gru_w_ih"].T + params["gru_b_ih"]
  gh = hid @ params["gru_w_hh"].T + params["gru_b_hh"]
  r = jax.nn.sigmoid(gi[:, :H] + gh[:, :H])
  z = jax.nn.sigmoid(gi[:, H:2 * H] + gh[:, H:2 * H])
  n = jnp.tanh(gi[:, 2 * H:] + r * gh[:, 2 * H:])
  h_new = (1.0 - z) * n + z * hid
  logits = h_new @ params["out_w"].T + params["out_b"]
  log_probs = jax.nn.log_softmax(logits, axis=1)
  return log_probs, h_new.reshape(1, 1, H), attn_w


if __name__ == "__main__":
  key = jax.random.PRNGKey(0)
  kp, kh, ke = jax.random.split(key, 3)

  params = init_params(kp)
  prepared = prepare_params(params)   # one-time packing, off the hot path

  T = 6
  tokens = jnp.array([3, 7, 1, 0, 11, 5], dtype=jnp.int32)
  hidden0 = jax.random.normal(kh, (1, 1, HIDDEN), jnp.float32) * 0.5
  encoder_outputs = jax.random.normal(ke, (MAX_LENGTH, HIDDEN), jnp.float32)

  # Fused multi-step decode (teacher-forced token sequence), one pallas_call.
  logp_seq, hid_seq, attn_seq = attn_decoder_decode(tokens, hidden0,
                                                    encoder_outputs, prepared)
  jax.block_until_ready((logp_seq, hid_seq, attn_seq))

  # Step-by-step plain-JAX reference.
  hid = hidden0
  for i in range(T):
    ref_lp, hid, ref_aw = _reference_forward(tokens[i], hid, encoder_outputs,
                                             params)
    assert jnp.allclose(logp_seq[i:i + 1], ref_lp, atol=1e-4, rtol=1e-4)
    assert jnp.allclose(hid_seq[i:i + 1], hid.reshape(1, HIDDEN),
                        atol=1e-4, rtol=1e-4)
    assert jnp.allclose(attn_seq[i:i + 1], ref_aw, atol=1e-4, rtol=1e-4)

  # Single-step API (original module forward signature) check.
  lp1, h1, aw1 = attn_decoder_forward(tokens[0], hidden0, encoder_outputs,
                                      prepared)
  jax.block_until_ready((lp1, h1, aw1))
  ref_lp1, ref_h1, ref_aw1 = _reference_forward(tokens[0], hidden0,
                                                encoder_outputs, params)
  assert jnp.allclose(lp1, ref_lp1, atol=1e-4, rtol=1e-4)
  assert jnp.allclose(h1, ref_h1, atol=1e-4, rtol=1e-4)
  assert jnp.allclose(aw1, ref_aw1, atol=1e-4, rtol=1e-4)

  print("KERNEL_OK")
</pallas_src>

<mosaic_0001>
module attributes {stable_mosaic.version = 11 : i64} {
  func.func @_fused_decoder_kernel(%arg0: memref<6xi32, #tpu.memory_space<smem>>, %arg1: memref<24x32xf32, #tpu.memory_space<vmem>>, %arg2: memref<1x32xf32, #tpu.memory_space<vmem>>, %arg3: memref<10x32xf32, #tpu.memory_space<vmem>>, %arg4: memref<32x256xf32, #tpu.memory_space<vmem>>, %arg5: memref<32x256xf32, #tpu.memory_space<vmem>>, %arg6: memref<32x32xf32, #tpu.memory_space<vmem>>, %arg7: memref<32x96xf32, #tpu.memory_space<vmem>>, %arg8: memref<32x24xf32, #tpu.memory_space<vmem>>, %arg9: memref<5x128xf32, #tpu.memory_space<vmem>>, %arg10: memref<6x8x128xf32, #tpu.memory_space<vmem>>, %arg11: memref<6x256xf32, #tpu.memory_space<vmem>>) attributes {dimension_semantics = [], scalar_prefetch = 0 : i64, scratch_operands = 1 : i64, tpu.core_type = #tpu.core_type<tc>} {
    %0 = tpu.iota {dimensions = array<i32: 1>} : vector<1x24xi32>
    %c0 = arith.constant 0 : index
    %1 = memref.load %arg0[%c0] : memref<6xi32, #tpu.memory_space<smem>>
    %2 = vector.broadcast %1 : i32 to vector<1x24xi32>
    %3 = arith.cmpi eq, %0, %2 : vector<1x24xi32>
    %4 = arith.extui %3 : vector<1x24xi1> to vector<1x24xi32>
    %5 = arith.sitofp %4 : vector<1x24xi32> to vector<1x24xf32>
    %c1 = arith.constant 1 : index
    %6 = memref.load %arg0[%c1] : memref<6xi32, #tpu.memory_space<smem>>
    %7 = vector.broadcast %6 : i32 to vector<1x24xi32>
    %8 = arith.cmpi eq, %0, %7 : vector<1x24xi32>
    %9 = arith.extui %8 : vector<1x24xi1> to vector<1x24xi32>
    %10 = arith.sitofp %9 : vector<1x24xi32> to vector<1x24xf32>
    %c2 = arith.constant 2 : index
    %11 = memref.load %arg0[%c2] : memref<6xi32, #tpu.memory_space<smem>>
    %12 = vector.broadcast %11 : i32 to vector<1x24xi32>
    %13 = arith.cmpi eq, %0, %12 : vector<1x24xi32>
    %14 = arith.extui %13 : vector<1x24xi1> to vector<1x24xi32>
    %15 = arith.sitofp %14 : vector<1x24xi32> to vector<1x24xf32>
    %c3 = arith.constant 3 : index
    %16 = memref.load %arg0[%c3] : memref<6xi32, #tpu.memory_space<smem>>
    %17 = vector.broadcast %16 : i32 to vector<1x24xi32>
    %18 = arith.cmpi eq, %0, %17 : vector<1x24xi32>
    %19 = arith.extui %18 : vector<1x24xi1> to vector<1x24xi32>
    %20 = arith.sitofp %19 : vector<1x24xi32> to vector<1x24xf32>
    %c4 = arith.constant 4 : index
    %21 = memref.load %arg0[%c4] : memref<6xi32, #tpu.memory_space<smem>>
    %22 = vector.broadcast %21 : i32 to vector<1x24xi32>
    %23 = arith.cmpi eq, %0, %22 : vector<1x24xi32>
    %24 = arith.extui %23 : vector<1x24xi1> to vector<1x24xi32>
    %25 = arith.sitofp %24 : vector<1x24xi32> to vector<1x24xf32>
    %c5 = arith.constant 5 : index
    %26 = memref.load %arg0[%c5] : memref<6xi32, #tpu.memory_space<smem>>
    %27 = vector.broadcast %26 : i32 to vector<1x24xi32>
    %28 = arith.cmpi eq, %0, %27 : vector<1x24xi32>
    %29 = arith.extui %28 : vector<1x24xi1> to vector<1x24xi32>
    %30 = arith.sitofp %29 : vector<1x24xi32> to vector<1x24xf32>
    %31 = tpu.concatenate %5, %10, %15, %20, %25, %30 in 0 : vector<1x24xf32>, vector<1x24xf32>, vector<1x24xf32>, vector<1x24xf32>, vector<1x24xf32>, vector<1x24xf32> -> vector<6x24xf32>
    %c0_0 = arith.constant 0 : index
    %c0_1 = arith.constant 0 : index
    %32 = vector.load %arg1[%c0_0, %c0_1] : memref<24x32xf32, #tpu.memory_space<vmem>>, vector<24x32xf32>
    %cst = arith.constant dense<0.000000e+00> : vector<6x32xf32>
    %33 = tpu.matmul %31, %32, %cst {dimension_numbers = #tpu.dot_dimension_numbers<[1], [0], [0], [1], [0, 0, 1, 1], [], []>} : vector<6x24xf32>, vector<24x32xf32>, vector<6x32xf32> -> vector<6x32xf32>
    %c0_2 = arith.constant 0 : index
    %c0_3 = arith.constant 0 : index
    %34 = vector.load %arg4[%c0_2, %c0_3] : memref<32x256xf32, #tpu.memory_space<vmem>>, vector<32x256xf32>
    %cst_4 = arith.constant dense<0.000000e+00> : vector<6x256xf32>
    %35 = tpu.matmul %33, %34, %cst_4 {dimension_numbers = #tpu.dot_dimension_numbers<[1], [0], [0], [1], [0, 0, 1, 1], [], []>} : vector<6x32xf32>, vector<32x256xf32>, vector<6x256xf32> -> vector<6x256xf32>
    %c0_5 = arith.constant 0 : index
    %c0_6 = arith.constant 0 : index
    %36 = vector.load %arg11[%c0_5, %c0_6] : memref<6x256xf32, #tpu.memory_space<vmem>>, vector<6x256xf32>
    tpu.vector_store %arg11[%c0_5, %c0_6], %35 {strides = array<i32>} : memref<6x256xf32, #tpu.memory_space<vmem>>, vector<6x256xf32>,
    %c0_7 = arith.constant 0 : index
    %c0_8 = arith.constant 0 : index
    %37 = vector.load %arg9[%c0_7, %c0_8] : memref<5x128xf32, #tpu.memory_space<vmem>>, vector<5x128xf32>
    %38 = vector.extract_strided_slice %37 {offsets = [0, 0], sizes = [1, 10], strides = [1, 1]} : vector<5x128xf32> to vector<1x10xf32>
    %39 = vector.extract_strided_slice %37 {offsets = [1, 0], sizes = [1, 32], strides = [1, 1]} : vector<5x128xf32> to vector<1x32xf32>
    %40 = vector.extract_strided_slice %37 {offsets = [2, 0], sizes = [1, 96], strides = [1, 1]} : vector<5x128xf32> to vector<1x96xf32>
    %41 = vector.extract_strided_slice %37 {offsets = [3, 0], sizes = [1, 96], strides = [1, 1]} : vector<5x128xf32> to vector<1x96xf32>
    %42 = vector.extract_strided_slice %37 {offsets = [4, 0], sizes = [1, 24], strides = [1, 1]} : vector<5x128xf32> to vector<1x24xf32>
    %c0_9 = arith.constant 0 : index
    %c0_10 = arith.constant 0 : index
    %43 = vector.load %arg3[%c0_9, %c0_10] : memref<10x32xf32, #tpu.memory_space<vmem>>, vector<10x32xf32>
    %c0_11 = arith.constant 0 : index
    %c0_12 = arith.constant 0 : index
    %44 = vector.load %arg5[%c0_11, %c0_12] : memref<32x256xf32, #tpu.memory_space<vmem>>, vector<32x256xf32>
    %c0_13 = arith.constant 0 : index
    %c0_14 = arith.constant 0 : index
    %45 = vector.load %arg6[%c0_13, %c0_14] : memref<32x32xf32, #tpu.memory_space<vmem>>, vector<32x32xf32>
    %c0_15 = arith.constant 0 : index
    %c0_16 = arith.constant 0 : index
    %46 = vector.load %arg7[%c0_15, %c0_16] : memref<32x96xf32, #tpu.memory_space<vmem>>, vector<32x96xf32>
    %c0_17 = arith.constant 0 : index
    %c0_18 = arith.constant 0 : index
    %47 = vector.load %arg8[%c0_17, %c0_18] : memref<32x24xf32, #tpu.memory_space<vmem>>, vector<32x24xf32>
    %cst_19 = arith.constant 0.000000e+00 : f32
    %48 = vector.broadcast %cst_19 : f32 to vector<1x104xf32>
    %cst_20 = arith.constant 0.000000e+00 : f32
    %49 = vector.broadcast %cst_20 : f32 to vector<1x96xf32>
    %cst_21 = arith.constant 0.000000e+00 : f32
    %50 = vector.broadcast %cst_21 : f32 to vector<1x118xf32>
    %cst_22 = arith.constant 0.000000e+00 : f32
    %51 = vector.broadcast %cst_22 : f32 to vector<5x128xf32>
    %c0_23 = arith.constant 0 : index
    %c0_24 = arith.constant 0 : index
    %52 = vector.load %arg2[%c0_23, %c0_24] : memref<1x32xf32, #tpu.memory_space<vmem>>, vector<1x32xf32>
    %c0_i32 = arith.constant 0 : i32
    %53 = arith.index_cast %c0_i32 : i32 to index
    %c0_25 = arith.constant 0 : index
    %54 = vector.load %arg11[%53, %c0_25] : memref<6x256xf32, #tpu.memory_space<vmem>>, vector<1x256xf32>
    %cst_26 = arith.constant dense<0.000000e+00> : vector<1x256xf32>
    %55 = tpu.matmul %52, %44, %cst_26 {dimension_numbers = #tpu.dot_dimension_numbers<[1], [0], [0], [1], [0, 0, 1, 1], [], []>} : vector<1x32xf32>, vector<32x256xf32>, vector<1x256xf32> -> vector<1x256xf32>
    %56 = vector.extract_strided_slice %54 {offsets = [0, 0], sizes = [1, 10], strides = [1, 1]} : vector<1x256xf32> to vector<1x10xf32>
    %57 = vector.extract_strided_slice %55 {offsets = [0, 0], sizes = [1, 10], strides = [1, 1]} : vector<1x256xf32> to vector<1x10xf32>
    %58 = arith.addf %56, %57 : vector<1x10xf32>
    %59 = arith.addf %58, %38 : vector<1x10xf32>
    %cst_27 = arith.constant dense<0xFF800000> : vector<1xf32>
    %60 = vector.multi_reduction <maximumf>, %59, %cst_27 [1] : vector<1x10xf32> to vector<1xf32>
    %61 = vector.shape_cast %60 : vector<1xf32> to vector<1x1xf32>
    %62 = vector.broadcast %61 : vector<1x1xf32> to vector<1x10xf32>
    %63 = arith.subf %59, %62 : vector<1x10xf32>
    %64 = math.exp %63 : vector<1x10xf32>
    %cst_28 = arith.constant dense<0.000000e+00> : vector<1xf32>
    %65 = vector.multi_reduction <add>, %64, %cst_28 [1] : vector<1x10xf32> to vector<1xf32>
    %66 = vector.shape_cast %65 : vector<1xf32> to vector<1x1xf32>
    %67 = tpu.reciprocal %66 : vector<1x1xf32> -> vector<1x1xf32>
    %68 = vector.broadcast %67 : vector<1x1xf32> to vector<1x10xf32>
    %69 = arith.mulf %64, %68 : vector<1x10xf32>
    %cst_29 = arith.constant dense<0.000000e+00> : vector<1x32xf32>
    %70 = tpu.matmul %69, %43, %cst_29 {dimension_numbers = #tpu.dot_dimension_numbers<[1], [0], [0], [1], [0, 0, 1, 1], [], []>} : vector<1x10xf32>, vector<10x32xf32>, vector<1x32xf32> -> vector<1x32xf32>
    %71 = vector.extract_strided_slice %54 {offsets = [0, 128], sizes = [1, 32], strides = [1, 1]} : vector<1x256xf32> to vector<1x32xf32>
    %cst_30 = arith.constant dense<0.000000e+00> : vector<1x32xf32>
    %72 = tpu.matmul %70, %45, %cst_30 {dimension_numbers = #tpu.dot_dimension_numbers<[1], [0], [0], [1], [0, 0, 1, 1], [], []>} : vector<1x32xf32>, vector<32x32xf32>, vector<1x32xf32> -> vector<1x32xf32>
    %73 = arith.addf %71, %72 : vector<1x32xf32>
    %74 = arith.addf %73, %39 : vector<1x32xf32>
    %cst_31 = arith.constant 0.000000e+00 : f32
    %75 = vector.broadcast %cst_31 : f32 to vector<1x32xf32>
    %76 = arith.maximumf %74, %75 : vector<1x32xf32>
    %cst_32 = arith.constant dense<0.000000e+00> : vector<1x96xf32>
    %77 = tpu.matmul %76, %46, %cst_32 {dimension_numbers = #tpu.dot_dimension_numbers<[1], [0], [0], [1], [0, 0, 1, 1], [], []>} : vector<1x32xf32>, vector<32x96xf32>, vector<1x96xf32> -> vector<1x96xf32>
    %78 = arith.addf %77, %40 : vector<1x96xf32>
    %79 = vector.extract_strided_slice %55 {offsets = [0, 128], sizes = [1, 96], strides = [1, 1]} : vector<1x256xf32> to vector<1x96xf32>
    %80 = arith.addf %79, %41 : vector<1x96xf32>
    %81 = vector.extract_strided_slice %78 {offsets = [0, 0], sizes = [1, 32], strides = [1, 1]} : vector<1x96xf32> to vector<1x32xf32>
    %82 = vector.extract_strided_slice %80 {offsets = [0, 0], sizes = [1, 32], strides = [1, 1]} : vector<1x96xf32> to vector<1x32xf32>
    %83 = arith.addf %81, %82 : vector<1x32xf32>
    %84 = arith.negf %83 : vector<1x32xf32>
    %85 = math.exp %84 : vector<1x32xf32>
    %cst_33 = arith.constant 1.000000e+00 : f32
    %86 = vector.broadcast %cst_33 : f32 to vector<1x32xf32>
    %87 = arith.addf %86, %85 : vector<1x32xf32>
    %88 = arith.divf %86, %87 : vector<1x32xf32>
    %89 = vector.extract_strided_slice %78 {offsets = [0, 32], sizes = [1, 32], strides = [1, 1]} : vector<1x96xf32> to vector<1x32xf32>
    %90 = vector.extract_strided_slice %80 {offsets = [0, 32], sizes = [1, 32], strides = [1, 1]} : vector<1x96xf32> to vector<1x32xf32>
    %91 = arith.addf %89, %90 : vector<1x32xf32>
    %92 = arith.negf %91 : vector<1x32xf32>
    %93 = math.exp %92 : vector<1x32xf32>
    %cst_34 = arith.constant 1.000000e+00 : f32
    %94 = vector.broadcast %cst_34 : f32 to vector<1x32xf32>
    %95 = arith.addf %94, %93 : vector<1x32xf32>
    %96 = arith.divf %94, %95 : vector<1x32xf32>
    %97 = vector.extract_strided_slice %78 {offsets = [0, 64], sizes = [1, 32], strides = [1, 1]} : vector<1x96xf32> to vector<1x32xf32>
    %98 = vector.extract_strided_slice %80 {offsets = [0, 64], sizes = [1, 32], strides = [1, 1]} : vector<1x96xf32> to vector<1x32xf32>
    %99 = arith.mulf %88, %98 : vector<1x32xf32>
    %100 = arith.addf %97, %99 : vector<1x32xf32>
    %101 = math.tanh %100 : vector<1x32xf32>
    %cst_35 = arith.constant 1.000000e+00 : f32
    %102 = vector.broadcast %cst_35 : f32 to vector<1x32xf32>
    %103 = arith.subf %102, %96 : vector<1x32xf32>
    %104 = arith.mulf %103, %101 : vector<1x32xf32>
    %105 = arith.mulf %96, %52 : vector<1x32xf32>
    %106 = arith.addf %104, %105 : vector<1x32xf32>
    %cst_36 = arith.constant dense<0.000000e+00> : vector<1x24xf32>
    %107 = tpu.matmul %106, %47, %cst_36 {dimension_numbers = #tpu.dot_dimension_numbers<[1], [0], [0], [1], [0, 0, 1, 1], [], []>} : vector<1x32xf32>, vector<32x24xf32>, vector<1x24xf32> -> vector<1x24xf32>
    %108 = arith.addf %107, %42 : vector<1x24xf32>
    %cst_37 = arith.constant dense<0xFF800000> : vector<1xf32>
    %109 = vector.multi_reduction <maximumf>, %108, %cst_37 [1] : vector<1x24xf32> to vector<1xf32>
    %110 = vector.shape_cast %109 : vector<1xf32> to vector<1x1xf32>
    %111 = vector.broadcast %110 : vector<1x1xf32> to vector<1x24xf32>
    %112 = arith.subf %108, %111 : vector<1x24xf32>
    %113 = math.exp %112 : vector<1x24xf32>
    %cst_38 = arith.constant dense<0.000000e+00> : vector<1xf32>
    %114 = vector.multi_reduction <add>, %113, %cst_38 [1] : vector<1x24xf32> to vector<1xf32>
    %115 = vector.shape_cast %114 : vector<1xf32> to vector<1x1xf32>
    %116 = math.log %115 : vector<1x1xf32>
    %117 = arith.addf %116, %110 : vector<1x1xf32>
    %118 = vector.broadcast %117 : vector<1x1xf32> to vector<1x24xf32>
    %119 = arith.subf %108, %118 : vector<1x24xf32>
    %120 = tpu.concatenate %119, %48 in 1 : vector<1x24xf32>, vector<1x104xf32> -> vector<1x128xf32>
    %121 = tpu.concatenate %106, %49 in 1 : vector<1x32xf32>, vector<1x96xf32> -> vector<1x128xf32>
    %122 = tpu.concatenate %69, %50 in 1 : vector<1x10xf32>, vector<1x118xf32> -> vector<1x128xf32>
    %123 = tpu.concatenate %120, %121, %122, %51 in 0 : vector<1x128xf32>, vector<1x128xf32>, vector<1x128xf32>, vector<5x128xf32> -> vector<8x128xf32>
    %124 = arith.index_cast %c0_i32 : i32 to index
    %c0_39 = arith.constant 0 : index
    %c0_40 = arith.constant 0 : index
    %125 = vector.load %arg10[%124, %c0_39, %c0_40] : memref<6x8x128xf32, #tpu.memory_space<vmem>>, vector<1x8x128xf32>
    %126 = vector.shape_cast %125 : vector<1x8x128xf32> to vector<8x128xf32>
    %127 = vector.shape_cast %123 : vector<8x128xf32> to vector<1x8x128xf32>
    tpu.vector_store %arg10[%124, %c0_39, %c0_40], %127 {strides = array<i32>} : memref<6x8x128xf32, #tpu.memory_space<vmem>>, vector<1x8x128xf32>,
    %c1_i32 = arith.constant 1 : i32
    %128 = arith.index_cast %c1_i32 : i32 to index
    %c0_41 = arith.constant 0 : index
    %129 = vector.load %arg11[%128, %c0_41] : memref<6x256xf32, #tpu.memory_space<vmem>>, vector<1x256xf32>
    %cst_42 = arith.constant dense<0.000000e+00> : vector<1x256xf32>
    %130 = tpu.matmul %106, %44, %cst_42 {dimension_numbers = #tpu.dot_dimension_numbers<[1], [0], [0], [1], [0, 0, 1, 1], [], []>} : vector<1x32xf32>, vector<32x256xf32>, vector<1x256xf32> -> vector<1x256xf32>
    %131 = vector.extract_strided_slice %129 {offsets = [0, 0], sizes = [1, 10], strides = [1, 1]} : vector<1x256xf32> to vector<1x10xf32>
    %132 = vector.extract_strided_slice %130 {offsets = [0, 0], sizes = [1, 10], strides = [1, 1]} : vector<1x256xf32> to vector<1x10xf32>
    %133 = arith.addf %131, %132 : vector<1x10xf32>
    %134 = arith.addf %133, %38 : vector<1x10xf32>
    %cst_43 = arith.constant dense<0xFF800000> : vector<1xf32>
    %135 = vector.multi_reduction <maximumf>, %134, %cst_43 [1] : vector<1x10xf32> to vector<1xf32>
    %136 = vector.shape_cast %135 : vector<1xf32> to vector<1x1xf32>
    %137 = vector.broadcast %136 : vector<1x1xf32> to vector<1x10xf32>
    %138 = arith.subf %134, %137 : vector<1x10xf32>
    %139 = math.exp %138 : vector<1x10xf32>
    %cst_44 = arith.constant dense<0.000000e+00> : vector<1xf32>
    %140 = vector.multi_reduction <add>, %139, %cst_44 [1] : vector<1x10xf32> to vector<1xf32>
    %141 = vector.shape_cast %140 : vector<1xf32> to vector<1x1xf32>
    %142 = tpu.reciprocal %141 : vector<1x1xf32> -> vector<1x1xf32>
    %143 = vector.broadcast %142 : vector<1x1xf32> to vector<1x10xf32>
    %144 = arith.mulf %139, %143 : vector<1x10xf32>
    %cst_45 = arith.constant dense<0.000000e+00> : vector<1x32xf32>
    %145 = tpu.matmul %144, %43, %cst_45 {dimension_numbers = #tpu.dot_dimension_numbers<[1], [0], [0], [1], [0, 0, 1, 1], [], []>} : vector<1x10xf32>, vector<10x32xf32>, vector<1x32xf32> -> vector<1x32xf32>
    %146 = vector.extract_strided_slice %129 {offsets = [0, 128], sizes = [1, 32], strides = [1, 1]} : vector<1x256xf32> to vector<1x32xf32>
    %cst_46 = arith.constant dense<0.000000e+00> : vector<1x32xf32>
    %147 = tpu.matmul %145, %45, %cst_46 {dimension_numbers = #tpu.dot_dimension_numbers<[1], [0], [0], [1], [0, 0, 1, 1], [], []>} : vector<1x32xf32>, vector<32x32xf32>, vector<1x32xf32> -> vector<1x32xf32>
    %148 = arith.addf %146, %147 : vector<1x32xf32>
    %149 = arith.addf %148, %39 : vector<1x32xf32>
    %cst_47 = arith.constant 0.000000e+00 : f32
    %150 = vector.broadcast %cst_47 : f32 to vector<1x32xf32>
    %151 = arith.maximumf %149, %150 : vector<1x32xf32>
    %cst_48 = arith.constant dense<0.000000e+00> : vector<1x96xf32>
    %152 = tpu.matmul %151, %46, %cst_48 {dimension_numbers = #tpu.dot_dimension_numbers<[1], [0], [0], [1], [0, 0, 1, 1], [], []>} : vector<1x32xf32>, vector<32x96xf32>, vector<1x96xf32> -> vector<1x96xf32>
    %153 = arith.addf %152, %40 : vector<1x96xf32>
    %154 = vector.extract_strided_slice %130 {offsets = [0, 128], sizes = [1, 96], strides = [1, 1]} : vector<1x256xf32> to vector<1x96xf32>
    %155 = arith.addf %154, %41 : vector<1x96xf32>
    %156 = vector.extract_strided_slice %153 {offsets = [0, 0], sizes = [1, 32], strides = [1, 1]} : vector<1x96xf32> to vector<1x32xf32>
    %157 = vector.extract_strided_slice %155 {offsets = [0, 0], sizes = [1, 32], strides = [1, 1]} : vector<1x96xf32> to vector<1x32xf32>
    %158 = arith.addf %156, %157 : vector<1x32xf32>
    %159 = arith.negf %158 : vector<1x32xf32>
    %160 = math.exp %159 : vector<1x32xf32>
    %cst_49 = arith.constant 1.000000e+00 : f32
    %161 = vector.broadcast %cst_49 : f32 to vector<1x32xf32>
    %162 = arith.addf %161, %160 : vector<1x32xf32>
    %163 = arith.divf %161, %162 : vector<1x32xf32>
    %164 = vector.extract_strided_slice %153 {offsets = [0, 32], sizes = [1, 32], strides = [1, 1]} : vector<1x96xf32> to vector<1x32xf32>
    %165 = vector.extract_strided_slice %155 {offsets = [0, 32], sizes = [1, 32], strides = [1, 1]} : vector<1x96xf32> to vector<1x32xf32>
    %166 = arith.addf %164, %165 : vector<1x32xf32>
    %167 = arith.negf %166 : vector<1x32xf32>
    %168 = math.exp %167 : vector<1x32xf32>
    %cst_50 = arith.constant 1.000000e+00 : f32
    %169 = vector.broadcast %cst_50 : f32 to vector<1x32xf32>
    %170 = arith.addf %169, %168 : vector<1x32xf32>
    %171 = arith.divf %169, %170 : vector<1x32xf32>
    %172 = vector.extract_strided_slice %153 {offsets = [0, 64], sizes = [1, 32], strides = [1, 1]} : vector<1x96xf32> to vector<1x32xf32>
    %173 = vector.extract_strided_slice %155 {offsets = [0, 64], sizes = [1, 32], strides = [1, 1]} : vector<1x96xf32> to vector<1x32xf32>
    %174 = arith.mulf %163, %173 : vector<1x32xf32>
    %175 = arith.addf %172, %174 : vector<1x32xf32>
    %176 = math.tanh %175 : vector<1x32xf32>
    %cst_51 = arith.constant 1.000000e+00 : f32
    %177 = vector.broadcast %cst_51 : f32 to vector<1x32xf32>
    %178 = arith.subf %177, %171 : vector<1x32xf32>
    %179 = arith.mulf %178, %176 : vector<1x32xf32>
    %180 = arith.mulf %171, %106 : vector<1x32xf32>
    %181 = arith.addf %179, %180 : vector<1x32xf32>
    %cst_52 = arith.constant dense<0.000000e+00> : vector<1x24xf32>
    %182 = tpu.matmul %181, %47, %cst_52 {dimension_numbers = #tpu.dot_dimension_numbers<[1], [0], [0], [1], [0, 0, 1, 1], [], []>} : vector<1x32xf32>, vector<32x24xf32>, vector<1x24xf32> -> vector<1x24xf32>
    %183 = arith.addf %182, %42 : vector<1x24xf32>
    %cst_53 = arith.constant dense<0xFF800000> : vector<1xf32>
    %184 = vector.multi_reduction <maximumf>, %183, %cst_53 [1] : vector<1x24xf32> to vector<1xf32>
    %185 = vector.shape_cast %184 : vector<1xf32> to vector<1x1xf32>
    %186 = vector.broadcast %185 : vector<1x1xf32> to vector<1x24xf32>
    %187 = arith.subf %183, %186 : vector<1x24xf32>
    %188 = math.exp %187 : vector<1x24xf32>
    %cst_54 = arith.constant dense<0.000000e+00> : vector<1xf32>
    %189 = vector.multi_reduction <add>, %188, %cst_54 [1] : vector<1x24xf32> to vector<1xf32>
    %190 = vector.shape_cast %189 : vector<1xf32> to vector<1x1xf32>
    %191 = math.log %190 : vector<1x1xf32>
    %192 = arith.addf %191, %185 : vector<1x1xf32>
    %193 = vector.broadcast %192 : vector<1x1xf32> to vector<1x24xf32>
    %194 = arith.subf %183, %193 : vector<1x24xf32>
    %195 = tpu.concatenate %194, %48 in 1 : vector<1x24xf32>, vector<1x104xf32> -> vector<1x128xf32>
    %196 = tpu.concatenate %181, %49 in 1 : vector<1x32xf32>, vector<1x96xf32> -> vector<1x128xf32>
    %197 = tpu.concatenate %144, %50 in 1 : vector<1x10xf32>, vector<1x118xf32> -> vector<1x128xf32>
    %198 = tpu.concatenate %195, %196, %197, %51 in 0 : vector<1x128xf32>, vector<1x128xf32>, vector<1x128xf32>, vector<5x128xf32> -> vector<8x128xf32>
    %199 = arith.index_cast %c1_i32 : i32 to index
    %c0_55 = arith.constant 0 : index
    %c0_56 = arith.constant 0 : index
    %200 = vector.load %arg10[%199, %c0_55, %c0_56] : memref<6x8x128xf32, #tpu.memory_space<vmem>>, vector<1x8x128xf32>
    %201 = vector.shape_cast %200 : vector<1x8x128xf32> to vector<8x128xf32>
    %202 = vector.shape_cast %198 : vector<8x128xf32> to vector<1x8x128xf32>
    tpu.vector_store %arg10[%199, %c0_55, %c0_56], %202 {strides = array<i32>} : memref<6x8x128xf32, #tpu.memory_space<vmem>>, vector<1x8x128xf32>,
    %c2_i32 = arith.constant 2 : i32
    %203 = arith.index_cast %c2_i32 : i32 to index
    %c0_57 = arith.constant 0 : index
    %204 = vector.load %arg11[%203, %c0_57] : memref<6x256xf32, #tpu.memory_space<vmem>>, vector<1x256xf32>
    %cst_58 = arith.constant dense<0.000000e+00> : vector<1x256xf32>
    %205 = tpu.matmul %181, %44, %cst_58 {dimension_numbers = #tpu.dot_dimension_numbers<[1], [0], [0], [1], [0, 0, 1, 1], [], []>} : vector<1x32xf32>, vector<32x256xf32>, vector<1x256xf32> -> vector<1x256xf32>
    %206 = vector.extract_strided_slice %204 {offsets = [0, 0], sizes = [1, 10], strides = [1, 1]} : vector<1x256xf32> to vector<1x10xf32>
    %207 = vector.extract_strided_slice %205 {offsets = [0, 0], sizes = [1, 10], strides = [1, 1]} : vector<1x256xf32> to vector<1x10xf32>
    %208 = arith.addf %206, %207 : vector<1x10xf32>
    %209 = arith.addf %208, %38 : vector<1x10xf32>
    %cst_59 = arith.constant dense<0xFF800000> : vector<1xf32>
    %210 = vector.multi_reduction <maximumf>, %209, %cst_59 [1] : vector<1x10xf32> to vector<1xf32>
    %211 = vector.shape_cast %210 : vector<1xf32> to vector<1x1xf32>
    %212 = vector.broadcast %211 : vector<1x1xf32> to vector<1x10xf32>
    %213 = arith.subf %209, %212 : vector<1x10xf32>
    %214 = math.exp %213 : vector<1x10xf32>
    %cst_60 = arith.constant dense<0.000000e+00> : vector<1xf32>
    %215 = vector.multi_reduction <add>, %214, %cst_60 [1] : vector<1x10xf32> to vector<1xf32>
    %216 = vector.shape_cast %215 : vector<1xf32> to vector<1x1xf32>
    %217 = tpu.reciprocal %216 : vector<1x1xf32> -> vector<1x1xf32>
    %218 = vector.broadcast %217 : vector<1x1xf32> to vector<1x10xf32>
    %219 = arith.mulf %214, %218 : vector<1x10xf32>
    %cst_61 = arith.constant dense<0.000000e+00> : vector<1x32xf32>
    %220 = tpu.matmul %219, %43, %cst_61 {dimension_numbers = #tpu.dot_dimension_numbers<[1], [0], [0], [1], [0, 0, 1, 1], [], []>} : vector<1x10xf32>, vector<10x32xf32>, vector<1x32xf32> -> vector<1x32xf32>
    %221 = vector.extract_strided_slice %204 {offsets = [0, 128], sizes = [1, 32], strides = [1, 1]} : vector<1x256xf32> to vector<1x32xf32>
    %cst_62 = arith.constant dense<0.000000e+00> : vector<1x32xf32>
    %222 = tpu.matmul %220, %45, %cst_62 {dimension_numbers = #tpu.dot_dimension_numbers<[1], [0], [0], [1], [0, 0, 1, 1], [], []>} : vector<1x32xf32>, vector<32x32xf32>, vector<1x32xf32> -> vector<1x32xf32>
    %223 = arith.addf %221, %222 : vector<1x32xf32>
    %224 = arith.addf %223, %39 : vector<1x32xf32>
    %cst_63 = arith.constant 0.000000e+00 : f32
    %225 = vector.broadcast %cst_63 : f32 to vector<1x32xf32>
    %226 = arith.maximumf %224, %225 : vector<1x32xf32>
    %cst_64 = arith.constant dense<0.000000e+00> : vector<1x96xf32>
    %227 = tpu.matmul %226, %46, %cst_64 {dimension_numbers = #tpu.dot_dimension_numbers<[1], [0], [0], [1], [0, 0, 1, 1], [], []>} : vector<1x32xf32>, vector<32x96xf32>, vector<1x96xf32> -> vector<1x96xf32>
    %228 = arith.addf %227, %40 : vector<1x96xf32>
    %229 = vector.extract_strided_slice %205 {offsets = [0, 128], sizes = [1, 96], strides = [1, 1]} : vector<1x256xf32> to vector<1x96xf32>
    %230 = arith.addf %229, %41 : vector<1x96xf32>
    %231 = vector.extract_strided_slice %228 {offsets = [0, 0], sizes = [1, 32], strides = [1, 1]} : vector<1x96xf32> to vector<1x32xf32>
    %232 = vector.extract_strided_slice %230 {offsets = [0, 0], sizes = [1, 32], strides = [1, 1]} : vector<1x96xf32> to vector<1x32xf32>
    %233 = arith.addf %231, %232 : vector<1x32xf32>
    %234 = arith.negf %233 : vector<1x32xf32>
    %235 = math.exp %234 : vector<1x32xf32>
    %cst_65 = arith.constant 1.000000e+00 : f32
    %236 = vector.broadcast %cst_65 : f32 to vector<1x32xf32>
    %237 = arith.addf %236, %235 : vector<1x32xf32>
    %238 = arith.divf %236, %237 : vector<1x32xf32>
    %239 = vector.extract_strided_slice %228 {offsets = [0, 32], sizes = [1, 32], strides = [1, 1]} : vector<1x96xf32> to vector<1x32xf32>
    %240 = vector.extract_strided_slice %230 {offsets = [0, 32], sizes = [1, 32], strides = [1, 1]} : vector<1x96xf32> to vector<1x32xf32>
    %241 = arith.addf %239, %240 : vector<1x32xf32>
    %242 = arith.negf %241 : vector<1x32xf32>
    %243 = math.exp %242 : vector<1x32xf32>
    %cst_66 = arith.constant 1.000000e+00 : f32
    %244 = vector.broadcast %cst_66 : f32 to vector<1x32xf32>
    %245 = arith.addf %244, %243 : vector<1x32xf32>
    %246 = arith.divf %244, %245 : vector<1x32xf32>
    %247 = vector.extract_strided_slice %228 {offsets = [0, 64], sizes = [1, 32], strides = [1, 1]} : vector<1x96xf32> to vector<1x32xf32>
    %248 = vector.extract_strided_slice %230 {offsets = [0, 64], sizes = [1, 32], strides = [1, 1]} : vector<1x96xf32> to vector<1x32xf32>
    %249 = arith.mulf %238, %248 : vector<1x32xf32>
    %250 = arith.addf %247, %249 : vector<1x32xf32>
    %251 = math.tanh %250 : vector<1x32xf32>
    %cst_67 = arith.constant 1.000000e+00 : f32
    %252 = vector.broadcast %cst_67 : f32 to vector<1x32xf32>
    %253 = arith.subf %252, %246 : vector<1x32xf32>
    %254 = arith.mulf %253, %251 : vector<1x32xf32>
    %255 = arith.mulf %246, %181 : vector<1x32xf32>
    %256 = arith.addf %254, %255 : vector<1x32xf32>
    %cst_68 = arith.constant dense<0.000000e+00> : vector<1x24xf32>
    %257 = tpu.matmul %256, %47, %cst_68 {dimension_numbers = #tpu.dot_dimension_numbers<[1], [0], [0], [1], [0, 0, 1, 1], [], []>} : vector<1x32xf32>, vector<32x24xf32>, vector<1x24xf32> -> vector<1x24xf32>
    %258 = arith.addf %257, %42 : vector<1x24xf32>
    %cst_69 = arith.constant dense<0xFF800000> : vector<1xf32>
    %259 = vector.multi_reduction <maximumf>, %258, %cst_69 [1] : vector<1x24xf32> to vector<1xf32>
    %260 = vector.shape_cast %259 : vector<1xf32> to vector<1x1xf32>
    %261 = vector.broadcast %260 : vector<1x1xf32> to vector<1x24xf32>
    %262 = arith.subf %258, %261 : vector<1x24xf32>
    %263 = math.exp %262 : vector<1x24xf32>
    %cst_70 = arith.constant dense<0.000000e+00> : vector<1xf32>
    %264 = vector.multi_reduction <add>, %263, %cst_70 [1] : vector<1x24xf32> to vector<1xf32>
    %265 = vector.shape_cast %264 : vector<1xf32> to vector<1x1xf32>
    %266 = math.log %265 : vector<1x1xf32>
    %267 = arith.addf %266, %260 : vector<1x1xf32>
    %268 = vector.broadcast %267 : vector<1x1xf32> to vector<1x24xf32>
    %269 = arith.subf %258, %268 : vector<1x24xf32>
    %270 = tpu.concatenate %269, %48 in 1 : vector<1x24xf32>, vector<1x104xf32> -> vector<1x128xf32>
    %271 = tpu.concatenate %256, %49 in 1 : vector<1x32xf32>, vector<1x96xf32> -> vector<1x128xf32>
    %272 = tpu.concatenate %219, %50 in 1 : vector<1x10xf32>, vector<1x118xf32> -> vector<1x128xf32>
    %273 = tpu.concatenate %270, %271, %272, %51 in 0 : vector<1x128xf32>, vector<1x128xf32>, vector<1x128xf32>, vector<5x128xf32> -> vector<8x128xf32>
    %274 = arith.index_cast %c2_i32 : i32 to index
    %c0_71 = arith.constant 0 : index
    %c0_72 = arith.constant 0 : index
    %275 = vector.load %arg10[%274, %c0_71, %c0_72] : memref<6x8x128xf32, #tpu.memory_space<vmem>>, vector<1x8x128xf32>
    %276 = vector.shape_cast %275 : vector<1x8x128xf32> to vector<8x128xf32>
    %277 = vector.shape_cast %273 : vector<8x128xf32> to vector<1x8x128xf32>
    tpu.vector_store %arg10[%274, %c0_71, %c0_72], %277 {strides = array<i32>} : memref<6x8x128xf32, #tpu.memory_space<vmem>>, vector<1x8x128xf32>,
    %c3_i32 = arith.constant 3 : i32
    %278 = arith.index_cast %c3_i32 : i32 to index
    %c0_73 = arith.constant 0 : index
    %279 = vector.load %arg11[%278, %c0_73] : memref<6x256xf32, #tpu.memory_space<vmem>>, vector<1x256xf32>
    %cst_74 = arith.constant dense<0.000000e+00> : vector<1x256xf32>
    %280 = tpu.matmul %256, %44, %cst_74 {dimension_numbers = #tpu.dot_dimension_numbers<[1], [0], [0], [1], [0, 0, 1, 1], [], []>} : vector<1x32xf32>, vector<32x256xf32>, vector<1x256xf32> -> vector<1x256xf32>
    %281 = vector.extract_strided_slice %279 {offsets = [0, 0], sizes = [1, 10], strides = [1, 1]} : vector<1x256xf32> to vector<1x10xf32>
    %282 = vector.extract_strided_slice %280 {offsets = [0, 0], sizes = [1, 10], strides = [1, 1]} : vector<1x256xf32> to vector<1x10xf32>
    %283 = arith.addf %281, %282 : vector<1x10xf32>
    %284 = arith.addf %283, %38 : vector<1x10xf32>
    %cst_75 = arith.constant dense<0xFF800000> : vector<1xf32>
    %285 = vector.multi_reduction <maximumf>, %284, %cst_75 [1] : vector<1x10xf32> to vector<1xf32>
    %286 = vector.shape_cast %285 : vector<1xf32> to vector<1x1xf32>
    %287 = vector.broadcast %286 : vector<1x1xf32> to vector<1x10xf32>
    %288 = arith.subf %284, %287 : vector<1x10xf32>
    %289 = math.exp %288 : vector<1x10xf32>
    %cst_76 = arith.constant dense<0.000000e+00> : vector<1xf32>
    %290 = vector.multi_reduction <add>, %289, %cst_76 [1] : vector<1x10xf32> to vector<1xf32>
    %291 = vector.shape_cast %290 : vector<1xf32> to vector<1x1xf32>
    %292 = tpu.reciprocal %291 : vector<1x1xf32> -> vector<1x1xf32>
    %293 = vector.broadcast %292 : vector<1x1xf32> to vector<1x10xf32>
    %294 = arith.mulf %289, %293 : vector<1x10xf32>
    %cst_77 = arith.constant dense<0.000000e+00> : vector<1x32xf32>
    %295 = tpu.matmul %294, %43, %cst_77 {dimension_numbers = #tpu.dot_dimension_numbers<[1], [0], [0], [1], [0, 0, 1, 1], [], []>} : vector<1x10xf32>, vector<10x32xf32>, vector<1x32xf32> -> vector<1x32xf32>
    %296 = vector.extract_strided_slice %279 {offsets = [0, 128], sizes = [1, 32], strides = [1, 1]} : vector<1x256xf32> to vector<1x32xf32>
    %cst_78 = arith.constant dense<0.000000e+00> : vector<1x32xf32>
    %297 = tpu.matmul %295, %45, %cst_78 {dimension_numbers = #tpu.dot_dimension_numbers<[1], [0], [0], [1], [0, 0, 1, 1], [], []>} : vector<1x32xf32>, vector<32x32xf32>, vector<1x32xf32> -> vector<1x32xf32>
    %298 = arith.addf %296, %297 : vector<1x32xf32>
    %299 = arith.addf %298, %39 : vector<1x32xf32>
    %cst_79 = arith.constant 0.000000e+00 : f32
    %300 = vector.broadcast %cst_79 : f32 to vector<1x32xf32>
    %301 = arith.maximumf %299, %300 : vector<1x32xf32>
    %cst_80 = arith.constant dense<0.000000e+00> : vector<1x96xf32>
    %302 = tpu.matmul %301, %46, %cst_80 {dimension_numbers = #tpu.dot_dimension_numbers<[1], [0], [0], [1], [0, 0, 1, 1], [], []>} : vector<1x32xf32>, vector<32x96xf32>, vector<1x96xf32> -> vector<1x96xf32>
    %303 = arith.addf %302, %40 : vector<1x96xf32>
    %304 = vector.extract_strided_slice %280 {offsets = [0, 128], sizes = [1, 96], strides = [1, 1]} : vector<1x256xf32> to vector<1x96xf32>
    %305 = arith.addf %304, %41 : vector<1x96xf32>
    %306 = vector.extract_strided_slice %303 {offsets = [0, 0], sizes = [1, 32], strides = [1, 1]} : vector<1x96xf32> to vector<1x32xf32>
    %307 = vector.extract_strided_slice %305 {offsets = [0, 0], sizes = [1, 32], strides = [1, 1]} : vector<1x96xf32> to vector<1x32xf32>
    %308 = arith.addf %306, %307 : vector<1x32xf32>
    %309 = arith.negf %308 : vector<1x32xf32>
    %310 = math.exp %309 : vector<1x32xf32>
    %cst_81 = arith.constant 1.000000e+00 : f32
    %311 = vector.broadcast %cst_81 : f32 to vector<1x32xf32>
    %312 = arith.addf %311, %310 : vector<1x32xf32>
    %313 = arith.divf %311, %312 : vector<1x32xf32>
    %314 = vector.extract_strided_slice %303 {offsets = [0, 32], sizes = [1, 32], strides = [1, 1]} : vector<1x96xf32> to vector<1x32xf32>
    %315 = vector.extract_strided_slice %305 {offsets = [0, 32], sizes = [1, 32], strides = [1, 1]} : vector<1x96xf32> to vector<1x32xf32>
    %316 = arith.addf %314, %315 : vector<1x32xf32>
    %317 = arith.negf %316 : vector<1x32xf32>
    %318 = math.exp %317 : vector<1x32xf32>
    %cst_82 = arith.constant 1.000000e+00 : f32
    %319 = vector.broadcast %cst_82 : f32 to vector<1x32xf32>
    %320 = arith.addf %319, %318 : vector<1x32xf32>
    %321 = arith.divf %319, %320 : vector<1x32xf32>
    %322 = vector.extract_strided_slice %303 {offsets = [0, 64], sizes = [1, 32], strides = [1, 1]} : vector<1x96xf32> to vector<1x32xf32>
    %323 = vector.extract_strided_slice %305 {offsets = [0, 64], sizes = [1, 32], strides = [1, 1]} : vector<1x96xf32> to vector<1x32xf32>
    %324 = arith.mulf %313, %323 : vector<1x32xf32>
    %325 = arith.addf %322, %324 : vector<1x32xf32>
    %326 = math.tanh %325 : vector<1x32xf32>
    %cst_83 = arith.constant 1.000000e+00 : f32
    %327 = vector.broadcast %cst_83 : f32 to vector<1x32xf32>
    %328 = arith.subf %327, %321 : vector<1x32xf32>
    %329 = arith.mulf %328, %326 : vector<1x32xf32>
    %330 = arith.mulf %321, %256 : vector<1x32xf32>
    %331 = arith.addf %329, %330 : vector<1x32xf32>
    %cst_84 = arith.constant dense<0.000000e+00> : vector<1x24xf32>
    %332 = tpu.matmul %331, %47, %cst_84 {dimension_numbers = #tpu.dot_dimension_numbers<[1], [0], [0], [1], [0, 0, 1, 1], [], []>} : vector<1x32xf32>, vector<32x24xf32>, vector<1x24xf32> -> vector<1x24xf32>
    %333 = arith.addf %332, %42 : vector<1x24xf32>
    %cst_85 = arith.constant dense<0xFF800000> : vector<1xf32>
    %334 = vector.multi_reduction <maximumf>, %333, %cst_85 [1] : vector<1x24xf32> to vector<1xf32>
    %335 = vector.shape_cast %334 : vector<1xf32> to vector<1x1xf32>
    %336 = vector.broadcast %335 : vector<1x1xf32> to vector<1x24xf32>
    %337 = arith.subf %333, %336 : vector<1x24xf32>
    %338 = math.exp %337 : vector<1x24xf32>
    %cst_86 = arith.constant dense<0.000000e+00> : vector<1xf32>
    %339 = vector.multi_reduction <add>, %338, %cst_86 [1] : vector<1x24xf32> to vector<1xf32>
    %340 = vector.shape_cast %339 : vector<1xf32> to vector<1x1xf32>
    %341 = math.log %340 : vector<1x1xf32>
    %342 = arith.addf %341, %335 : vector<1x1xf32>
    %343 = vector.broadcast %342 : vector<1x1xf32> to vector<1x24xf32>
    %344 = arith.subf %333, %343 : vector<1x24xf32>
    %345 = tpu.concatenate %344, %48 in 1 : vector<1x24xf32>, vector<1x104xf32> -> vector<1x128xf32>
    %346 = tpu.concatenate %331, %49 in 1 : vector<1x32xf32>, vector<1x96xf32> -> vector<1x128xf32>
    %347 = tpu.concatenate %294, %50 in 1 : vector<1x10xf32>, vector<1x118xf32> -> vector<1x128xf32>
    %348 = tpu.concatenate %345, %346, %347, %51 in 0 : vector<1x128xf32>, vector<1x128xf32>, vector<1x128xf32>, vector<5x128xf32> -> vector<8x128xf32>
    %349 = arith.index_cast %c3_i32 : i32 to index
    %c0_87 = arith.constant 0 : index
    %c0_88 = arith.constant 0 : index
    %350 = vector.load %arg10[%349, %c0_87, %c0_88] : memref<6x8x128xf32, #tpu.memory_space<vmem>>, vector<1x8x128xf32>
    %351 = vector.shape_cast %350 : vector<1x8x128xf32> to vector<8x128xf32>
    %352 = vector.shape_cast %348 : vector<8x128xf32> to vector<1x8x128xf32>
    tpu.vector_store %arg10[%349, %c0_87, %c0_88], %352 {strides = array<i32>} : memref<6x8x128xf32, #tpu.memory_space<vmem>>, vector<1x8x128xf32>,
    %c4_i32 = arith.constant 4 : i32
    %353 = arith.index_cast %c4_i32 : i32 to index
    %c0_89 = arith.constant 0 : index
    %354 = vector.load %arg11[%353, %c0_89] : memref<6x256xf32, #tpu.memory_space<vmem>>, vector<1x256xf32>
    %cst_90 = arith.constant dense<0.000000e+00> : vector<1x256xf32>
    %355 = tpu.matmul %331, %44, %cst_90 {dimension_numbers = #tpu.dot_dimension_numbers<[1], [0], [0], [1], [0, 0, 1, 1], [], []>} : vector<1x32xf32>, vector<32x256xf32>, vector<1x256xf32> -> vector<1x256xf32>
    %356 = vector.extract_strided_slice %354 {offsets = [0, 0], sizes = [1, 10], strides = [1, 1]} : vector<1x256xf32> to vector<1x10xf32>
    %357 = vector.extract_strided_slice %355 {offsets = [0, 0], sizes = [1, 10], strides = [1, 1]} : vector<1x256xf32> to vector<1x10xf32>
    %358 = arith.addf %356, %357 : vector<1x10xf32>
    %359 = arith.addf %358, %38 : vector<1x10xf32>
    %cst_91 = arith.constant dense<0xFF800000> : vector<1xf32>
    %360 = vector.multi_reduction <maximumf>, %359, %cst_91 [1] : vector<1x10xf32> to vector<1xf32>
    %361 = vector.shape_cast %360 : vector<1xf32> to vector<1x1xf32>
    %362 = vector.broadcast %361 : vector<1x1xf32> to vector<1x10xf32>
    %363 = arith.subf %359, %362 : vector<1x10xf32>
    %364 = math.exp %363 : vector<1x10xf32>
    %cst_92 = arith.constant dense<0.000000e+00> : vector<1xf32>
    %365 = vector.multi_reduction <add>, %364, %cst_92 [1] : vector<1x10xf32> to vector<1xf32>
    %366 = vector.shape_cast %365 : vector<1xf32> to vector<1x1xf32>
    %367 = tpu.reciprocal %366 : vector<1x1xf32> -> vector<1x1xf32>
    %368 = vector.broadcast %367 : vector<1x1xf32> to vector<1x10xf32>
    %369 = arith.mulf %364, %368 : vector<1x10xf32>
    %cst_93 = arith.constant dense<0.000000e+00> : vector<1x32xf32>
    %370 = tpu.matmul %369, %43, %cst_93 {dimension_numbers = #tpu.dot_dimension_numbers<[1], [0], [0], [1], [0, 0, 1, 1], [], []>} : vector<1x10xf32>, vector<10x32xf32>, vector<1x32xf32> -> vector<1x32xf32>
    %371 = vector.extract_strided_slice %354 {offsets = [0, 128], sizes = [1, 32], strides = [1, 1]} : vector<1x256xf32> to vector<1x32xf32>
    %cst_94 = arith.constant dense<0.000000e+00> : vector<1x32xf32>
    %372 = tpu.matmul %370, %45, %cst_94 {dimension_numbers = #tpu.dot_dimension_numbers<[1], [0], [0], [1], [0, 0, 1, 1], [], []>} : vector<1x32xf32>, vector<32x32xf32>, vector<1x32xf32> -> vector<1x32xf32>
    %373 = arith.addf %371, %372 : vector<1x32xf32>
    %374 = arith.addf %373, %39 : vector<1x32xf32>
    %cst_95 = arith.constant 0.000000e+00 : f32
    %375 = vector.broadcast %cst_95 : f32 to vector<1x32xf32>
    %376 = arith.maximumf %374, %375 : vector<1x32xf32>
    %cst_96 = arith.constant dense<0.000000e+00> : vector<1x96xf32>
    %377 = tpu.matmul %376, %46, %cst_96 {dimension_numbers = #tpu.dot_dimension_numbers<[1], [0], [0], [1], [0, 0, 1, 1], [], []>} : vector<1x32xf32>, vector<32x96xf32>, vector<1x96xf32> -> vector<1x96xf32>
    %378 = arith.addf %377, %40 : vector<1x96xf32>
    %379 = vector.extract_strided_slice %355 {offsets = [0, 128], sizes = [1, 96], strides = [1, 1]} : vector<1x256xf32> to vector<1x96xf32>
    %380 = arith.addf %379, %41 : vector<1x96xf32>
    %381 = vector.extract_strided_slice %378 {offsets = [0, 0], sizes = [1, 32], strides = [1, 1]} : vector<1x96xf32> to vector<1x32xf32>
    %382 = vector.extract_strided_slice %380 {offsets = [0, 0], sizes = [1, 32], strides = [1, 1]} : vector<1x96xf32> to vector<1x32xf32>
    %383 = arith.addf %381, %382 : vector<1x32xf32>
    %384 = arith.negf %383 : vector<1x32xf32>
    %385 = math.exp %384 : vector<1x32xf32>
    %cst_97 = arith.constant 1.000000e+00 : f32
    %386 = vector.broadcast %cst_97 : f32 to vector<1x32xf32>
    %387 = arith.addf %386, %385 : vector<1x32xf32>
    %388 = arith.divf %386, %387 : vector<1x32xf32>
    %389 = vector.extract_strided_slice %378 {offsets = [0, 32], sizes = [1, 32], strides = [1, 1]} : vector<1x96xf32> to vector<1x32xf32>
    %390 = vector.extract_strided_slice %380 {offsets = [0, 32], sizes = [1, 32], strides = [1, 1]} : vector<1x96xf32> to vector<1x32xf32>
    %391 = arith.addf %389, %390 : vector<1x32xf32>
    %392 = arith.negf %391 : vector<1x32xf32>
    %393 = math.exp %392 : vector<1x32xf32>
    %cst_98 = arith.constant 1.000000e+00 : f32
    %394 = vector.broadcast %cst_98 : f32 to vector<1x32xf32>
    %395 = arith.addf %394, %393 : vector<1x32xf32>
    %396 = arith.divf %394, %395 : vector<1x32xf32>
    %397 = vector.extract_strided_slice %378 {offsets = [0, 64], sizes = [1, 32], strides = [1, 1]} : vector<1x96xf32> to vector<1x32xf32>
    %398 = vector.extract_strided_slice %380 {offsets = [0, 64], sizes = [1, 32], strides = [1, 1]} : vector<1x96xf32> to vector<1x32xf32>
    %399 = arith.mulf %388, %398 : vector<1x32xf32>
    %400 = arith.addf %397, %399 : vector<1x32xf32>
    %401 = math.tanh %400 : vector<1x32xf32>
    %cst_99 = arith.constant 1.000000e+00 : f32
    %402 = vector.broadcast %cst_99 : f32 to vector<1x32xf32>
    %403 = arith.subf %402, %396 : vector<1x32xf32>
    %404 = arith.mulf %403, %401 : vector<1x32xf32>
    %405 = arith.mulf %396, %331 : vector<1x32xf32>
    %406 = arith.addf %404, %405 : vector<1x32xf32>
    %cst_100 = arith.constant dense<0.000000e+00> : vector<1x24xf32>
    %407 = tpu.matmul %406, %47, %cst_100 {dimension_numbers = #tpu.dot_dimension_numbers<[1], [0], [0], [1], [0, 0, 1, 1], [], []>} : vector<1x32xf32>, vector<32x24xf32>, vector<1x24xf32> -> vector<1x24xf32>
    %408 = arith.addf %407, %42 : vector<1x24xf32>
    %cst_101 = arith.constant dense<0xFF800000> : vector<1xf32>
    %409 = vector.multi_reduction <maximumf>, %408, %cst_101 [1] : vector<1x24xf32> to vector<1xf32>
    %410 = vector.shape_cast %409 : vector<1xf32> to vector<1x1xf32>
    %411 = vector.broadcast %410 : vector<1x1xf32> to vector<1x24xf32>
    %412 = arith.subf %408, %411 : vector<1x24xf32>
    %413 = math.exp %412 : vector<1x24xf32>
    %cst_102 = arith.constant dense<0.000000e+00> : vector<1xf32>
    %414 = vector.multi_reduction <add>, %413, %cst_102 [1] : vector<1x24xf32> to vector<1xf32>
    %415 = vector.shape_cast %414 : vector<1xf32> to vector<1x1xf32>
    %416 = math.log %415 : vector<1x1xf32>
    %417 = arith.addf %416, %410 : vector<1x1xf32>
    %418 = vector.broadcast %417 : vector<1x1xf32> to vector<1x24xf32>
    %419 = arith.subf %408, %418 : vector<1x24xf32>
    %420 = tpu.concatenate %419, %48 in 1 : vector<1x24xf32>, vector<1x104xf32> -> vector<1x128xf32>
    %421 = tpu.concatenate %406, %49 in 1 : vector<1x32xf32>, vector<1x96xf32> -> vector<1x128xf32>
    %422 = tpu.concatenate %369, %50 in 1 : vector<1x10xf32>, vector<1x118xf32> -> vector<1x128xf32>
    %423 = tpu.concatenate %420, %421, %422, %51 in 0 : vector<1x128xf32>, vector<1x128xf32>, vector<1x128xf32>, vector<5x128xf32> -> vector<8x128xf32>
    %424 = arith.index_cast %c4_i32 : i32 to index
    %c0_103 = arith.constant 0 : index
    %c0_104 = arith.constant 0 : index
    %425 = vector.load %arg10[%424, %c0_103, %c0_104] : memref<6x8x128xf32, #tpu.memory_space<vmem>>, vector<1x8x128xf32>
    %426 = vector.shape_cast %425 : vector<1x8x128xf32> to vector<8x128xf32>
    %427 = vector.shape_cast %423 : vector<8x128xf32> to vector<1x8x128xf32>
    tpu.vector_store %arg10[%424, %c0_103, %c0_104], %427 {strides = array<i32>} : memref<6x8x128xf32, #tpu.memory_space<vmem>>, vector<1x8x128xf32>,
    %c5_i32 = arith.constant 5 : i32
    %428 = arith.index_cast %c5_i32 : i32 to index
    %c0_105 = arith.constant 0 : index
    %429 = vector.load %arg11[%428, %c0_105] : memref<6x256xf32, #tpu.memory_space<vmem>>, vector<1x256xf32>
    %cst_106 = arith.constant dense<0.000000e+00> : vector<1x256xf32>
    %430 = tpu.matmul %406, %44, %cst_106 {dimension_numbers = #tpu.dot_dimension_numbers<[1], [0], [0], [1], [0, 0, 1, 1], [], []>} : vector<1x32xf32>, vector<32x256xf32>, vector<1x256xf32> -> vector<1x256xf32>
    %431 = vector.extract_strided_slice %429 {offsets = [0, 0], sizes = [1, 10], strides = [1, 1]} : vector<1x256xf32> to vector<1x10xf32>
    %432 = vector.extract_strided_slice %430 {offsets = [0, 0], sizes = [1, 10], strides = [1, 1]} : vector<1x256xf32> to vector<1x10xf32>
    %433 = arith.addf %431, %432 : vector<1x10xf32>
    %434 = arith.addf %433, %38 : vector<1x10xf32>
    %cst_107 = arith.constant dense<0xFF800000> : vector<1xf32>
    %435 = vector.multi_reduction <maximumf>, %434, %cst_107 [1] : vector<1x10xf32> to vector<1xf32>
    %436 = vector.shape_cast %435 : vector<1xf32> to vector<1x1xf32>
    %437 = vector.broadcast %436 : vector<1x1xf32> to vector<1x10xf32>
    %438 = arith.subf %434, %437 : vector<1x10xf32>
    %439 = math.exp %438 : vector<1x10xf32>
    %cst_108 = arith.constant dense<0.000000e+00> : vector<1xf32>
    %440 = vector.multi_reduction <add>, %439, %cst_108 [1] : vector<1x10xf32> to vector<1xf32>
    %441 = vector.shape_cast %440 : vector<1xf32> to vector<1x1xf32>
    %442 = tpu.reciprocal %441 : vector<1x1xf32> -> vector<1x1xf32>
    %443 = vector.broadcast %442 : vector<1x1xf32> to vector<1x10xf32>
    %444 = arith.mulf %439, %443 : vector<1x10xf32>
    %cst_109 = arith.constant dense<0.000000e+00> : vector<1x32xf32>
    %445 = tpu.matmul %444, %43, %cst_109 {dimension_numbers = #tpu.dot_dimension_numbers<[1], [0], [0], [1], [0, 0, 1, 1], [], []>} : vector<1x10xf32>, vector<10x32xf32>, vector<1x32xf32> -> vector<1x32xf32>
    %446 = vector.extract_strided_slice %429 {offsets = [0, 128], sizes = [1, 32], strides = [1, 1]} : vector<1x256xf32> to vector<1x32xf32>
    %cst_110 = arith.constant dense<0.000000e+00> : vector<1x32xf32>
    %447 = tpu.matmul %445, %45, %cst_110 {dimension_numbers = #tpu.dot_dimension_numbers<[1], [0], [0], [1], [0, 0, 1, 1], [], []>} : vector<1x32xf32>, vector<32x32xf32>, vector<1x32xf32> -> vector<1x32xf32>
    %448 = arith.addf %446, %447 : vector<1x32xf32>
    %449 = arith.addf %448, %39 : vector<1x32xf32>
    %cst_111 = arith.constant 0.000000e+00 : f32
    %450 = vector.broadcast %cst_111 : f32 to vector<1x32xf32>
    %451 = arith.maximumf %449, %450 : vector<1x32xf32>
    %cst_112 = arith.constant dense<0.000000e+00> : vector<1x96xf32>
    %452 = tpu.matmul %451, %46, %cst_112 {dimension_numbers = #tpu.dot_dimension_numbers<[1], [0], [0], [1], [0, 0, 1, 1], [], []>} : vector<1x32xf32>, vector<32x96xf32>, vector<1x96xf32> -> vector<1x96xf32>
    %453 = arith.addf %452, %40 : vector<1x96xf32>
    %454 = vector.extract_strided_slice %430 {offsets = [0, 128], sizes = [1, 96], strides = [1, 1]} : vector<1x256xf32> to vector<1x96xf32>
    %455 = arith.addf %454, %41 : vector<1x96xf32>
    %456 = vector.extract_strided_slice %453 {offsets = [0, 0], sizes = [1, 32], strides = [1, 1]} : vector<1x96xf32> to vector<1x32xf32>
    %457 = vector.extract_strided_slice %455 {offsets = [0, 0], sizes = [1, 32], strides = [1, 1]} : vector<1x96xf32> to vector<1x32xf32>
    %458 = arith.addf %456, %457 : vector<1x32xf32>
    %459 = arith.negf %458 : vector<1x32xf32>
    %460 = math.exp %459 : vector<1x32xf32>
    %cst_113 = arith.constant 1.000000e+00 : f32
    %461 = vector.broadcast %cst_113 : f32 to vector<1x32xf32>
    %462 = arith.addf %461, %460 : vector<1x32xf32>
    %463 = arith.divf %461, %462 : vector<1x32xf32>
    %464 = vector.extract_strided_slice %453 {offsets = [0, 32], sizes = [1, 32], strides = [1, 1]} : vector<1x96xf32> to vector<1x32xf32>
    %465 = vector.extract_strided_slice %455 {offsets = [0, 32], sizes = [1, 32], strides = [1, 1]} : vector<1x96xf32> to vector<1x32xf32>
    %466 = arith.addf %464, %465 : vector<1x32xf32>
    %467 = arith.negf %466 : vector<1x32xf32>
    %468 = math.exp %467 : vector<1x32xf32>
    %cst_114 = arith.constant 1.000000e+00 : f32
    %469 = vector.broadcast %cst_114 : f32 to vector<1x32xf32>
    %470 = arith.addf %469, %468 : vector<1x32xf32>
    %471 = arith.divf %469, %470 : vector<1x32xf32>
    %472 = vector.extract_strided_slice %453 {offsets = [0, 64], sizes = [1, 32], strides = [1, 1]} : vector<1x96xf32> to vector<1x32xf32>
    %473 = vector.extract_strided_slice %455 {offsets = [0, 64], sizes = [1, 32], strides = [1, 1]} : vector<1x96xf32> to vector<1x32xf32>
    %474 = arith.mulf %463, %473 : vector<1x32xf32>
    %475 = arith.addf %472, %474 : vector<1x32xf32>
    %476 = math.tanh %475 : vector<1x32xf32>
    %cst_115 = arith.constant 1.000000e+00 : f32
    %477 = vector.broadcast %cst_115 : f32 to vector<1x32xf32>
    %478 = arith.subf %477, %471 : vector<1x32xf32>
    %479 = arith.mulf %478, %476 : vector<1x32xf32>
    %480 = arith.mulf %471, %406 : vector<1x32xf32>
    %481 = arith.addf %479, %480 : vector<1x32xf32>
    %cst_116 = arith.constant dense<0.000000e+00> : vector<1x24xf32>
    %482 = tpu.matmul %481, %47, %cst_116 {dimension_numbers = #tpu.dot_dimension_numbers<[1], [0], [0], [1], [0, 0, 1, 1], [], []>} : vector<1x32xf32>, vector<32x24xf32>, vector<1x24xf32> -> vector<1x24xf32>
    %483 = arith.addf %482, %42 : vector<1x24xf32>
    %cst_117 = arith.constant dense<0xFF800000> : vector<1xf32>
    %484 = vector.multi_reduction <maximumf>, %483, %cst_117 [1] : vector<1x24xf32> to vector<1xf32>
    %485 = vector.shape_cast %484 : vector<1xf32> to vector<1x1xf32>
    %486 = vector.broadcast %485 : vector<1x1xf32> to vector<1x24xf32>
    %487 = arith.subf %483, %486 : vector<1x24xf32>
    %488 = math.exp %487 : vector<1x24xf32>
    %cst_118 = arith.constant dense<0.000000e+00> : vector<1xf32>
    %489 = vector.multi_reduction <add>, %488, %cst_118 [1] : vector<1x24xf32> to vector<1xf32>
    %490 = vector.shape_cast %489 : vector<1xf32> to vector<1x1xf32>
    %491 = math.log %490 : vector<1x1xf32>
    %492 = arith.addf %491, %485 : vector<1x1xf32>
    %493 = vector.broadcast %492 : vector<1x1xf32> to vector<1x24xf32>
    %494 = arith.subf %483, %493 : vector<1x24xf32>
    %495 = tpu.concatenate %494, %48 in 1 : vector<1x24xf32>, vector<1x104xf32> -> vector<1x128xf32>
    %496 = tpu.concatenate %481, %49 in 1 : vector<1x32xf32>, vector<1x96xf32> -> vector<1x128xf32>
    %497 = tpu.concatenate %444, %50 in 1 : vector<1x10xf32>, vector<1x118xf32> -> vector<1x128xf32>
    %498 = tpu.concatenate %495, %496, %497, %51 in 0 : vector<1x128xf32>, vector<1x128xf32>, vector<1x128xf32>, vector<5x128xf32> -> vector<8x128xf32>
    %499 = arith.index_cast %c5_i32 : i32 to index
    %c0_119 = arith.constant 0 : index
    %c0_120 = arith.constant 0 : index
    %500 = vector.load %arg10[%499, %c0_119, %c0_120] : memref<6x8x128xf32, #tpu.memory_space<vmem>>, vector<1x8x128xf32>
    %501 = vector.shape_cast %500 : vector<1x8x128xf32> to vector<8x128xf32>
    %502 = vector.shape_cast %498 : vector<8x128xf32> to vector<1x8x128xf32>
    tpu.vector_store %arg10[%499, %c0_119, %c0_120], %502 {strides = array<i32>} : memref<6x8x128xf32, #tpu.memory_space<vmem>>, vector<1x8x128xf32>,
    %c6_i32 = arith.constant 6 : i32
    return
  }
}

</mosaic_0001>

<llo_original>
// kernel: attn_decoder_decode.1
$region0: #{attn_decoder_decode.1}
  #allocation0 [shape = 'u32[]', space=smem, size = 0x4, offset = 0x4, fixed_abs, tag = 'smem constant byte address 0x4 - core index']
  #allocation1 [shape = 'u32[72,128]{1,0:T(1,128)}', space=vmem, size = 0x9000, scoped, tag = 'internal scratch']
  #allocation2 [shape = 'f32[6,256]{1,0:T(8,128)}', space=vmem, size = 0x2000, scoped, tag = 'scratch operand']
  %s0 = inlined_call_operand.hbm [shape: s32[6], index: 0, kind: input, shape index: {}]
  %s1 = inlined_call_operand.hbm [shape: f32[24,32], index: 1, kind: input, shape index: {}]
  %s2 = inlined_call_operand.hbm [shape: f32[1,32], index: 2, kind: input, shape index: {}]
  %s3 = inlined_call_operand.hbm [shape: f32[10,32], index: 3, kind: input, shape index: {}]
  %s4 = inlined_call_operand.hbm [shape: f32[32,256], index: 4, kind: input, shape index: {}]
  %s5 = inlined_call_operand.hbm [shape: f32[32,256], index: 5, kind: input, shape index: {}]
  %s6 = inlined_call_operand.vmem [shape: f32[32,32], index: 6, kind: input, shape index: {}]
  %s7 = inlined_call_operand.vmem [shape: f32[32,96], index: 7, kind: input, shape index: {}]
  %s8 = inlined_call_operand.vmem [shape: f32[32,24], index: 8, kind: input, shape index: {}]
  %s9 = inlined_call_operand.hbm [shape: f32[5,128], index: 9, kind: input, shape index: {}]
  %s10 = inlined_call_operand.vmem [shape: f32[6,8,128], index: 10, kind: output, shape index: {}]
  %s11 = sld [smem:[#allocation0]]
  $region78: #{attn_decoder_decode.1} parent=0
    _
  %s13 = ssub.s32 1, %s11
  %s14 = scalar_select 0, %s13, %s11
  $region1: #{attn_decoder_decode.1} parent=0
    #allocation3 [shape = 'u8[512]{0}', space=smem, size = 0x200, scoped, tag = 'input window, operand 0, single buffered']
    #allocation4 [shape = 's32[1]{0}', space=sflag, size = 0x4, scoped, tag = 'scoped memory for attn_decoder_decode.1']
    #allocation5 [shape = 's32[1]{0}', space=sflag, size = 0x4, scoped, tag = 'scoped memory for attn_decoder_decode.1']
    #allocation6 [shape = 'u8[12288]{0}', space=vmem, size = 0x3000, scoped, tag = 'input window, operand 1, single buffered']
    #allocation7 [shape = 'u8[512]{0}', space=vmem, size = 0x400, scoped, tag = 'input window, operand 2, single buffered']
    #allocation8 [shape = 's32[1]{0}', space=sflag, size = 0x4, scoped, tag = 'scoped memory for attn_decoder_decode.1']
    #allocation9 [shape = 'u8[8192]{0}', space=vmem, size = 0x2000, scoped, tag = 'input window, operand 3, single buffered']
    #allocation10 [shape = 'u8[32768]{0}', space=vmem, size = 0x8000, scoped, tag = 'input window, operand 4, single buffered']
    #allocation11 [shape = 's32[1]{0}', space=sflag, size = 0x4, scoped, tag = 'scoped memory for attn_decoder_decode.1']
    #allocation12 [shape = 'u8[32768]{0}', space=vmem, size = 0x8000, scoped, tag = 'input window, operand 5, single buffered']
    #allocation13 [shape = 'u8[4096]{0}', space=vmem, size = 0x1000, scoped, tag = 'input window, operand 9, single buffered']
    #allocation14 [shape = 's32[1]{0}', space=sflag, size = 0x4, scoped, tag = 'scoped memory for attn_decoder_decode.1']
    %15 = vsyncpa [#allocation5], 0
    %16 = vsyncpa [#allocation4], 0
    %17 = vsyncpa [#allocation8], 0
    %18 = vsyncpa [#allocation11], 0
    %19 = vsyncpa [#allocation14], 0
    // Predicated region
    $region2: #{attn_decoder_decode.1} parent=1 // pred_check
      _
    $region3: #{attn_decoder_decode.1} parent=1 // pred_check_branch
      %21 = sbr.rel (0) target = $region5
    $region4: #{attn_decoder_decode.1} parent=1 // pred_region
      %23 = vsyncadd [#allocation5], 0
      %s25 = sshll.u32 %s0, 4
      %s26 = int_to_ptr.hbm [resolvable:$true] %s25
      %28 = dma.hbm_to_smem %s26, 16, [#allocation3], [#allocation5]
    $region5: #{attn_decoder_decode.1} parent=1 // pred_fallthru
      _
    // Predicated region
    $region6: #{attn_decoder_decode.1} parent=1 // pred_check
      _
    $region7: #{attn_decoder_decode.1} parent=1 // pred_check_branch
      %30 = sbr.rel (0) target = $region9
    $region8: #{attn_decoder_decode.1} parent=1 // pred_region
      %32 = vsyncadd [#allocation4], 0
      %s33 = sshll.u32 %s1, 4
      %s34 = int_to_ptr.hbm [resolvable:$true] %s33
      %s35 = sshll.u32 [#allocation6], 4
      %s36 = int_to_ptr.vmem [resolvable:$true] %s35
      %41 = dma.hbm_to_vmem [thread:$0]  %s34, 384, %s36, [#allocation4], 128, 128, 8
    $region9: #{attn_decoder_decode.1} parent=1 // pred_fallthru
      _
    // Predicated region
    $region10: #{attn_decoder_decode.1} parent=1 // pred_check
      _
    $region11: #{attn_decoder_decode.1} parent=1 // pred_check_branch
      %43 = sbr.rel (0) target = $region13
    $region12: #{attn_decoder_decode.1} parent=1 // pred_region
      %45 = vsyncadd [#allocation8], 0
      %s47 = sshll.u32 %s2, 4
      %s48 = int_to_ptr.hbm [resolvable:$true] %s47
      %s49 = sshll.u32 [#allocation7], 4
      %s50 = int_to_ptr.vmem [resolvable:$true] %s49
      %52 = dma.hbm_to_vmem [thread:$0]  %s48, 16, %s50, [#allocation8]
    $region13: #{attn_decoder_decode.1} parent=1 // pred_fallthru
      _
    // Predicated region
    $region14: #{attn_decoder_decode.1} parent=1 // pred_check
      _
    $region15: #{attn_decoder_decode.1} parent=1 // pred_check_branch
      %54 = sbr.rel (0) target = $region17
    $region16: #{attn_decoder_decode.1} parent=1 // pred_region
      %56 = vsyncadd [#allocation8], 0
      %s57 = sshll.u32 %s3, 4
      %s58 = int_to_ptr.hbm [resolvable:$true] %s57
      %s59 = sshll.u32 [#allocation9], 4
      %s60 = int_to_ptr.vmem [resolvable:$true] %s59
      %65 = dma.hbm_to_vmem [thread:$0]  %s58, 256, %s60, [#allocation8], 128, 128, 8
    $region17: #{attn_decoder_decode.1} parent=1 // pred_fallthru
      _
    // Predicated region
    $region18: #{attn_decoder_decode.1} parent=1 // pred_check
      _
    $region19: #{attn_decoder_decode.1} parent=1 // pred_check_branch
      %67 = sbr.rel (0) target = $region21
    $region20: #{attn_decoder_decode.1} parent=1 // pred_region
      %69 = vsyncadd [#allocation11], 0
      %s70 = sshll.u32 %s4, 4
      %s71 = int_to_ptr.hbm [resolvable:$true] %s70
      %s72 = sshll.u32 [#allocation10], 4
      %s73 = int_to_ptr.vmem [resolvable:$true] %s72
      %78 = dma.hbm_to_vmem [thread:$0]  %s71, 1024, %s73, [#allocation11], 256, 256, 16
    $region21: #{attn_decoder_decode.1} parent=1 // pred_fallthru
      _
    // Predicated region
    $region22: #{attn_decoder_decode.1} parent=1 // pred_check
      _
    $region23: #{attn_decoder_decode.1} parent=1 // pred_check_branch
      %80 = sbr.rel (0) target = $region25
    $region24: #{attn_decoder_decode.1} parent=1 // pred_region
      %82 = vsyncadd [#allocation11], 0
      %s83 = sshll.u32 %s5, 4
      %s84 = int_to_ptr.hbm [resolvable:$true] %s83
      %s85 = sshll.u32 [#allocation12], 4
      %s86 = int_to_ptr.vmem [resolvable:$true] %s85
      %91 = dma.hbm_to_vmem [thread:$0]  %s84, 1024, %s86, [#allocation11], 256, 256, 16
    $region25: #{attn_decoder_decode.1} parent=1 // pred_fallthru
      _
    // Predicated region
    $region26: #{attn_decoder_decode.1} parent=1 // pred_check
      _
    $region27: #{attn_decoder_decode.1} parent=1 // pred_check_branch
      %93 = sbr.rel (0) target = $region29
    $region28: #{attn_decoder_decode.1} parent=1 // pred_region
      _
    $region29: #{attn_decoder_decode.1} parent=1 // pred_fallthru
      _
    // Predicated region
    $region30: #{attn_decoder_decode.1} parent=1 // pred_check
      _
    $region31: #{attn_decoder_decode.1} parent=1 // pred_check_branch
      %95 = sbr.rel (0) target = $region33
    $region32: #{attn_decoder_decode.1} parent=1 // pred_region
      _
    $region33: #{attn_decoder_decode.1} parent=1 // pred_fallthru
      _
    // Predicated region
    $region34: #{attn_decoder_decode.1} parent=1 // pred_check
      _
    $region35: #{attn_decoder_decode.1} parent=1 // pred_check_branch
      %97 = sbr.rel (0) target = $region37
    $region36: #{attn_decoder_decode.1} parent=1 // pred_region
      _
    $region37: #{attn_decoder_decode.1} parent=1 // pred_fallthru
      _
    // Predicated region
    $region38: #{attn_decoder_decode.1} parent=1 // pred_check
      _
    $region39: #{attn_decoder_decode.1} parent=1 // pred_check_branch
      %99 = sbr.rel (0) target = $region41
    $region40: #{attn_decoder_decode.1} parent=1 // pred_region
      %101 = vsyncadd [#allocation14], 0
      %s103 = sshll.u32 %s9, 4
      %s104 = int_to_ptr.hbm [resolvable:$true] %s103
      %s105 = sshll.u32 [#allocation13], 4
      %s106 = int_to_ptr.vmem [resolvable:$true] %s105
      %108 = dma.hbm_to_vmem [thread:$0]  %s104, 128, %s106, [#allocation14]
    $region41: #{attn_decoder_decode.1} parent=1 // pred_fallthru
      _
    // Predicated region
    $region42: #{attn_decoder_decode.1} parent=1 // pred_check
      _
    $region43: #{attn_decoder_decode.1} parent=1 // pred_check_branch
      %110 = sbr.rel (0) target = $region45
    $region44: #{attn_decoder_decode.1} parent=1 // pred_region
      %112 = dma.done [#allocation5], 16
    $region45: #{attn_decoder_decode.1} parent=1 // pred_fallthru
      _
    // Predicated region
    $region46: #{attn_decoder_decode.1} parent=1 // pred_check
      _
    $region47: #{attn_decoder_decode.1} parent=1 // pred_check_branch
      %114 = sbr.rel (0) target = $region49
    $region48: #{attn_decoder_decode.1} parent=1 // pred_region
      %116 = dma.done [#allocation4], 384
    $region49: #{attn_decoder_decode.1} parent=1 // pred_fallthru
      _
    // Predicated region
    $region50: #{attn_decoder_decode.1} parent=1 // pred_check
      _
    $region51: #{attn_decoder_decode.1} parent=1 // pred_check_branch
      %118 = sbr.rel (0) target = $region53
    $region52: #{attn_decoder_decode.1} parent=1 // pred_region
      %120 = dma.done [#allocation8], 16
    $region53: #{attn_decoder_decode.1} parent=1 // pred_fallthru
      _
    // Predicated region
    $region54: #{attn_decoder_decode.1} parent=1 // pred_check
      _
    $region55: #{attn_decoder_decode.1} parent=1 // pred_check_branch
      %122 = sbr.rel (0) target = $region57
    $region56: #{attn_decoder_decode.1} parent=1 // pred_region
      %124 = dma.done [#allocation8], 256
    $region57: #{attn_decoder_decode.1} parent=1 // pred_fallthru
      _
    // Predicated region
    $region58: #{attn_decoder_decode.1} parent=1 // pred_check
      _
    $region59: #{attn_decoder_decode.1} parent=1 // pred_check_branch
      %126 = sbr.rel (0) target = $region61
    $region60: #{attn_decoder_decode.1} parent=1 // pred_region
      %128 = dma.done [#allocation11], 1024
    $region61: #{attn_decoder_decode.1} parent=1 // pred_fallthru
      _
    // Predicated region
    $region62: #{attn_decoder_decode.1} parent=1 // pred_check
      _
    $region63: #{attn_decoder_decode.1} parent=1 // pred_check_branch
      %130 = sbr.rel (0) target = $region65
    $region64: #{attn_decoder_decode.1} parent=1 // pred_region
      %132 = dma.done [#allocation11], 1024
    $region65: #{attn_decoder_decode.1} parent=1 // pred_fallthru
      _
    // Predicated region
    $region66: #{attn_decoder_decode.1} parent=1 // pred_check
      _
    $region67: #{attn_decoder_decode.1} parent=1 // pred_check_branch
      %134 = sbr.rel (0) target = $region69
    $region68: #{attn_decoder_decode.1} parent=1 // pred_region
      %136 = dma.done [#allocation14], 128
    $region69: #{attn_decoder_decode.1} parent=1 // pred_fallthru
      _
    %137 = sfence
    %v138 = vlaneseq
    %v139 = vand.u32 %v138, 127
    %s140 = sld [smem:[#allocation3]]
    %v141 = vstv %s140
    %vm142 = vcmp.eq.s32.totalorder %v139, %v141
    %v143 = vsel %vm142, 1, 0
    %v144 = vcvt.s32.f32 %v143
    %s145 = sld [smem:[#allocation3 + $0x1]]
    %v146 = vstv %s145
    %vm147 = vcmp.eq.s32.totalorder %v139, %v146
    %v148 = vsel %vm147, 1, 0
    %v149 = vcvt.s32.f32 %v148
    %s150 = sld [smem:[#allocation3 + $0x2]]
    %v151 = vstv %s150
    %vm152 = vcmp.eq.s32.totalorder %v139, %v151
    %v153 = vsel %vm152, 1, 0
    %v154 = vcvt.s32.f32 %v153
    %s155 = sld [smem:[#allocation3 + $0x3]]
    %v156 = vstv %s155
    %vm157 = vcmp.eq.s32.totalorder %v139, %v156
    %v158 = vsel %vm157, 1, 0
    %v159 = vcvt.s32.f32 %v158
    %s160 = sld [smem:[#allocation3 + $0x4]]
    %v161 = vstv %s160
    %vm162 = vcmp.eq.s32.totalorder %v139, %v161
    %v163 = vsel %vm162, 1, 0
    %v164 = vcvt.s32.f32 %v163
    %s165 = sld [smem:[#allocation3 + $0x5]]
    %v166 = vstv %s165
    %vm167 = vcmp.eq.s32.totalorder %v139, %v166
    %v168 = vsel %vm167, 1, 0
    %v169 = vcvt.s32.f32 %v168
    %vm170 = vcmask 1040384
    %v171 = vsel %vm170, %v144, %v149
    %vm172 = vcmask 1041408
    %v173 = vsel %vm172, %v171, %v154
    %vm174 = vcmask 1042432
    %v175 = vsel %vm174, %v173, %v159
    %vm176 = vcmask 1043456
    %v177 = vsel %vm176, %v175, %v164
    %vm178 = vcmask 1044480
    %v179 = vsel %vm178, %v177, %v169
    %v180 = vld [vmem:[#allocation6] sm:$0xff]
    %v181 = vld [vmem:[#allocation6 + $0x8] sm:$0xff]
    %v182 = vld [vmem:[#allocation6 + $0x10] sm:$0xff]
    %vm183 = vcmask 195584
    %v185 = vsel %vm183, %v179, 0
    %187 = vmatpush.msra.mxu0 0.0
    %188 = vmatpush.msra.mxu0 0.0
    %189 = vmatpush.msra.mxu0 0.0
    %190 = vmatpush.msra.mxu0 0.0
    %191 = vmatpush.msra.mxu0 0.0
    %192 = vmatpush.msra.mxu0 0.0
    %193 = vmatpush.msra.mxu0 0.0
    %194 = vmatpush.msra.mxu0 0.0
    %195 = vmatpush.msra.mxu0 0.0
    %196 = vmatpush.msra.mxu0 0.0
    %197 = vmatpush.msra.mxu0 0.0
    %198 = vmatpush.msra.mxu0 0.0
    %199 = vmatpush.msra.mxu0 0.0
    %200 = vmatpush.msra.mxu0 %v182
    %201 = vmatpush.msra.mxu0 %v181
    %202 = vmatpush.msra.mxu0 %v180
    %203 = vmatmul.f32.gmra.mxu0 %v185
    %v204 = vpop.f32.mrf.mxu0
    %v205 = vadd.f32 0.0, %v204
    %206 = vdwg.mxu0
    %v207 = vld [vmem:[#allocation10] sm:$0xff]
    %v208 = vld [vmem:[#allocation10 + $0x8] sm:$0xff]
    %v209 = vld [vmem:[#allocation10 + $0x10] sm:$0xff]
    %v210 = vld [vmem:[#allocation10 + $0x18] sm:$0xff]
    %v211 = vld [vmem:[#allocation10 + $0x20] sm:$0xff]
    %v212 = vld [vmem:[#allocation10 + $0x28] sm:$0xff]
    %v213 = vld [vmem:[#allocation10 + $0x30] sm:$0xff]
    %v214 = vld [vmem:[#allocation10 + $0x38] sm:$0xff]
    %vm215 = vcmask 261120
    %v217 = vsel %vm215, %v205, 0
    %219 = vmatpush.msra.mxu0 0.0
    %220 = vmatpush.msra.mxu0 0.0
    %221 = vmatpush.msra.mxu0 0.0
    %222 = vmatpush.msra.mxu0 0.0
    %223 = vmatpush.msra.mxu0 0.0
    %224 = vmatpush.msra.mxu0 0.0
    %225 = vmatpush.msra.mxu0 0.0
    %226 = vmatpush.msra.mxu0 0.0
    %227 = vmatpush.msra.mxu0 0.0
    %228 = vmatpush.msra.mxu0 0.0
    %229 = vmatpush.msra.mxu0 0.0
    %230 = vmatpush.msra.mxu0 0.0
    %231 = vmatpush.msra.mxu0 %v213
    %232 = vmatpush.msra.mxu0 %v211
    %233 = vmatpush.msra.mxu0 %v209
    %234 = vmatpush.msra.mxu0 %v207
    %235 = vmatmul.f32.gmra.mxu0 %v217
    %v236 = vpop.f32.mrf.mxu0
    %v237 = vadd.f32 0.0, %v236
    %238 = vdwg.mxu0
    %239 = vmatpush.msra.mxu0 0.0
    %240 = vmatpush.msra.mxu0 0.0
    %241 = vmatpush.msra.mxu0 0.0
    %242 = vmatpush.msra.mxu0 0.0
    %243 = vmatpush.msra.mxu0 0.0
    %244 = vmatpush.msra.mxu0 0.0
    %245 = vmatpush.msra.mxu0 0.0
    %246 = vmatpush.msra.mxu0 0.0
    %247 = vmatpush.msra.mxu0 0.0
    %248 = vmatpush.msra.mxu0 0.0
    %249 = vmatpush.msra.mxu0 0.0
    %250 = vmatpush.msra.mxu0 0.0
    %251 = vmatpush.msra.mxu0 %v214
    %252 = vmatpush.msra.mxu0 %v212
    %253 = vmatpush.msra.mxu0 %v210
    %254 = vmatpush.msra.mxu0 %v208
    %255 = vmatmul.f32.gmra.mxu0 %v217
    %v256 = vpop.f32.mrf.mxu0
    %v257 = vadd.f32 0.0, %v256
    %258 = vdwg.mxu0
    %259 = vst [vmem:[#allocation2] sm:$0x3f] %v237
    %260 = vst [vmem:[#allocation2 + $0x8] sm:$0x3f] %v257
    %v261 = vld [vmem:[#allocation13] sm:$0x1f]
    %v262 = vld [vmem:[#allocation9] sm:$0xff]
    %v263 = vld [vmem:[#allocation9 + $0x8] sm:$0x3]
    %v264 = vld [vmem:[#allocation12] sm:$0xff]
    %v265 = vld [vmem:[#allocation12 + $0x8] sm:$0xff]
    %v266 = vld [vmem:[#allocation12 + $0x10] sm:$0xff]
    %v267 = vld [vmem:[#allocation12 + $0x18] sm:$0xff]
    %v268 = vld [vmem:[#allocation12 + $0x20] sm:$0xff]
    %v269 = vld [vmem:[#allocation12 + $0x28] sm:$0xff]
    %v270 = vld [vmem:[#allocation12 + $0x30] sm:$0xff]
    %v271 = vld [vmem:[#allocation12 + $0x38] sm:$0xff]
    %v272 = vld [vmem:[%s6] sm:$0xff]
    %v273 = vld [vmem:[%s6 + $0x8] sm:$0xff]
    %v274 = vld [vmem:[%s6 + $0x10] sm:$0xff]
    %v275 = vld [vmem:[%s6 + $0x18] sm:$0xff]
    %v276 = vld [vmem:[%s7] sm:$0xff]
    %v277 = vld [vmem:[%s7 + $0x8] sm:$0xff]
    %v278 = vld [vmem:[%s7 + $0x10] sm:$0xff]
    %v279 = vld [vmem:[%s7 + $0x18] sm:$0xff]
    %v280 = vld [vmem:[%s8] sm:$0xff]
    %v281 = vld [vmem:[%s8 + $0x8] sm:$0xff]
    %v282 = vld [vmem:[%s8 + $0x10] sm:$0xff]
    %v283 = vld [vmem:[%s8 + $0x18] sm:$0xff]
    %v284 = vld [vmem:[#allocation7] sm:$0x1]
    %v285 = vld [vmem:[#allocation2] ss:$8 sm:$0x3]
    %v287 = vsel %vm215, %v284, 0
    %289 = vmatpush.msra.mxu0 0.0
    %290 = vmatpush.msra.mxu0 0.0
    %291 = vmatpush.msra.mxu0 0.0
    %292 = vmatpush.msra.mxu0 0.0
    %293 = vmatpush.msra.mxu0 0.0
    %294 = vmatpush.msra.mxu0 0.0
    %295 = vmatpush.msra.mxu0 0.0
    %296 = vmatpush.msra.mxu0 0.0
    %297 = vmatpush.msra.mxu0 0.0
    %298 = vmatpush.msra.mxu0 0.0
    %299 = vmatpush.msra.mxu0 0.0
    %300 = vmatpush.msra.mxu0 0.0
    %301 = vmatpush.msra.mxu0 %v270
    %302 = vmatpush.msra.mxu0 %v268
    %303 = vmatpush.msra.mxu0 %v266
    %304 = vmatpush.msra.mxu0 %v264
    %305 = vmatmul.f32.gmra.mxu0 %v287
    %v306 = vpop.f32.mrf.mxu0
    %v307 = vadd.f32 0.0, %v306
    %308 = vdwg.mxu0
    %309 = vmatpush.msra.mxu0 0.0
    %310 = vmatpush.msra.mxu0 0.0
    %311 = vmatpush.msra.mxu0 0.0
    %312 = vmatpush.msra.mxu0 0.0
    %313 = vmatpush.msra.mxu0 0.0
    %314 = vmatpush.msra.mxu0 0.0
    %315 = vmatpush.msra.mxu0 0.0
    %316 = vmatpush.msra.mxu0 0.0
    %317 = vmatpush.msra.mxu0 0.0
    %318 = vmatpush.msra.mxu0 0.0
    %319 = vmatpush.msra.mxu0 0.0
    %320 = vmatpush.msra.mxu0 0.0
    %321 = vmatpush.msra.mxu0 %v271
    %322 = vmatpush.msra.mxu0 %v269
    %323 = vmatpush.msra.mxu0 %v267
    %324 = vmatpush.msra.mxu0 %v265
    %325 = vmatmul.f32.gmra.mxu0 %v287
    %v326 = vpop.f32.mrf.mxu0
    %v327 = vadd.f32 0.0, %v326
    %328 = vdwg.mxu0
    %v329 = vadd.f32 %v285, %v307
    %v330 = vadd.f32 %v329, %v261
    %vm331 = vcmask 73728
    %v332 = vsel %vm331, %v330, -inf
    %333 = vmax.xlane.f32.xlu0 %v332
    %v334 = vpop.xlane.xlu0 %333
    %v335 = vsub.f32 %v330, %v334
    %v336 = vmul.f32 %v335, 1.442695
    %v337 = vpow.pop %v336
    %v338 = vsel %vm331, %v337, 0.0
    %339 = vadd.xlane.f32.xlu0 %v338
    %v340 = vpop.xlane.xlu0 %339
    %v341 = vrcp.pop %v340
    %v342 = vmul.f32 %v340, %v341
    %v343 = vsub.f32 1.0, %v342
    %v344 = vmul.f32 %v341, %v343
    %v345 = vadd.f32 %v341, %v344
    %vm346 = vweird.f32 %v340
    %vm347 = vweird.f32 %v341
    %vm348 = vmor %vm346, %vm347
    %v349 = vsel %vm348, %v341, %v345
    %v350 = vand.u32 2147483647, %v340
    %vm351 = vcmp.eq.f32.partialorder %v350, 8.507059e+37
    %v352 = vand.u32 %v340, 2147483648
    %v353 = vor.u32 1.1754944e-38, %v352
    %v354 = vsel %vm351, %v353, %v349
    %v355 = vmul.f32 %v337, %v354
    %vm356 = vcmask 80896
    %v358 = vsel %vm356, %v355, 0
    %v361 = vsel %vm172, %v263, 0
    %363 = vmatpush.msra.mxu0 0.0
    %364 = vmatpush.msra.mxu0 0.0
    %365 = vmatpush.msra.mxu0 0.0
    %366 = vmatpush.msra.mxu0 0.0
    %367 = vmatpush.msra.mxu0 0.0
    %368 = vmatpush.msra.mxu0 0.0
    %369 = vmatpush.msra.mxu0 0.0
    %370 = vmatpush.msra.mxu0 0.0
    %371 = vmatpush.msra.mxu0 0.0
    %372 = vmatpush.msra.mxu0 0.0
    %373 = vmatpush.msra.mxu0 0.0
    %374 = vmatpush.msra.mxu0 0.0
    %375 = vmatpush.msra.mxu0 0.0
    %376 = vmatpush.msra.mxu0 0.0
    %377 = vmatpush.msra.mxu0 %v361
    %378 = vmatpush.msra.mxu0 %v262
    %379 = vmatmul.f32.gmra.mxu0 %v358
    %v380 = vpop.f32.mrf.mxu0
    %v381 = vadd.f32 0.0, %v380
    %382 = vdwg.mxu0
    %v384 = vsel %vm215, %v381, 0
    %386 = vmatpush.msra.mxu0 0.0
    %387 = vmatpush.msra.mxu0 0.0
    %388 = vmatpush.msra.mxu0 0.0
    %389 = vmatpush.msra.mxu0 0.0
    %390 = vmatpush.msra.mxu0 0.0
    %391 = vmatpush.msra.mxu0 0.0
    %392 = vmatpush.msra.mxu0 0.0
    %393 = vmatpush.msra.mxu0 0.0
    %394 = vmatpush.msra.mxu0 0.0
    %395 = vmatpush.msra.mxu0 0.0
    %396 = vmatpush.msra.mxu0 0.0
    %397 = vmatpush.msra.mxu0 0.0
    %398 = vmatpush.msra.mxu0 %v275
    %399 = vmatpush.msra.mxu0 %v274
    %400 = vmatpush.msra.mxu0 %v273
    %401 = vmatpush.msra.mxu0 %v272
    %402 = vmatmul.f32.gmra.mxu0 %v384
    %v403 = vpop.f32.mrf.mxu0
    %v404 = vadd.f32 0.0, %v403
    %405 = vdwg.mxu0
    %v407 = vrot.slane %v285, 1
    %v409 = vadd.f32 %v407, %v404
    %411 = vst [vmem:[#allocation1] sm:$0xff] %v261
    %s412 = scalar_lea.vmem [#allocation1], 1
    %v413 = vld [vmem:[%s412] ss:$9 sm:$0xff]
    %v415 = vadd.f32 %v409, %v413
    %v416 = vmax.f32 %v415, 0.0
    %v417 = vrot.slane %v261, 2
    %v420 = vsel %vm215, %v416, 0
    %422 = vmatpush.msra.mxu0 0.0
    %423 = vmatpush.msra.mxu0 0.0
    %424 = vmatpush.msra.mxu0 0.0
    %425 = vmatpush.msra.mxu0 0.0
    %426 = vmatpush.msra.mxu0 0.0
    %427 = vmatpush.msra.mxu0 0.0
    %428 = vmatpush.msra.mxu0 0.0
    %429 = vmatpush.msra.mxu0 0.0
    %430 = vmatpush.msra.mxu0 0.0
    %431 = vmatpush.msra.mxu0 0.0
    %432 = vmatpush.msra.mxu0 0.0
    %433 = vmatpush.msra.mxu0 0.0
    %434 = vmatpush.msra.mxu0 %v279
    %435 = vmatpush.msra.mxu0 %v278
    %436 = vmatpush.msra.mxu0 %v277
    %437 = vmatpush.msra.mxu0 %v276
    %438 = vmatmul.f32.gmra.mxu0 %v420
    %v439 = vpop.f32.mrf.mxu0
    %v440 = vadd.f32 %v417, %v439
    %441 = vdwg.mxu0
    %v442 = vrot.slane %v261, 3
    %v444 = vadd.f32 %v327, %v442
    %v445 = vadd.f32 %v440, %v444
    %v446 = vxor.u32 %v445, 2147483648
    %v447 = vmul.f32 %v446, 1.442695
    %v448 = vpow.pop %v447
    %v449 = vadd.f32 %v448, 1.0
    %v450 = vrcp.pop %v449
    %v451 = vmul.f32 %v449, %v450
    %v452 = vsub.f32 1.0, %v451
    %v453 = vmul.f32 %v450, %v452
    %v454 = vadd.f32 %v450, %v453
    %vm455 = vweird.f32 %v449
    %vm456 = vweird.f32 %v450
    %vm457 = vmor %vm455, %vm456
    %v458 = vsel %vm457, %v450, %v454
    %v459 = vand.u32 2147483647, %v449
    %vm460 = vcmp.eq.f32.partialorder %v459, 8.507059e+37
    %v461 = vand.u32 %v449, 2147483648
    %v462 = vor.u32 1.1754944e-38, %v461
    %v463 = vsel %vm460, %v462, %v458
    %v464 = vmul.f32 1.0, %v463
    %466 = vrot.lane.b32.xlu0 %v444, 64
    %v467 = vpop.permute.xlu0 %466
    %v469 = vmul.f32 %v464, %v467
    %471 = vrot.lane.b32.xlu0 %v469, 64
    %v472 = vpop.permute.xlu0 %471
    %v474 = vadd.f32 %v440, %v472
    %v475 = vtanh.pop %v474
    %v476 = vsub.f32 1.0, %v464
    %478 = vrot.lane.b32.xlu0 %v475, 96
    %v479 = vpop.permute.xlu0 %478
    %v481 = vmul.f32 %v476, %v479
    %v482 = vperm.slane %v284, 0
    %483 = vrot.lane.b32.xlu0 %v482, 32
    %v484 = vpop.permute.xlu0 %483
    %v486 = vmul.f32 %v464, %v484
    %v487 = vadd.f32 %v481, %v486
    %489 = vrot.lane.b32.xlu0 %v487, 96
    %v490 = vpop.permute.xlu0 %489
    %v491 = vrot.slane %v261, 4
    %v493 = vsel %vm215, %v490, 0
    %495 = vmatpush.msra.mxu0 0.0
    %496 = vmatpush.msra.mxu0 0.0
    %497 = vmatpush.msra.mxu0 0.0
    %498 = vmatpush.msra.mxu0 0.0
    %499 = vmatpush.msra.mxu0 0.0
    %500 = vmatpush.msra.mxu0 0.0
    %501 = vmatpush.msra.mxu0 0.0
    %502 = vmatpush.msra.mxu0 0.0
    %503 = vmatpush.msra.mxu0 0.0
    %504 = vmatpush.msra.mxu0 0.0
    %505 = vmatpush.msra.mxu0 0.0
    %506 = vmatpush.msra.mxu0 0.0
    %507 = vmatpush.msra.mxu0 %v283
    %508 = vmatpush.msra.mxu0 %v282
    %509 = vmatpush.msra.mxu0 %v281
    %510 = vmatpush.msra.mxu0 %v280
    %511 = vmatmul.f32.gmra.mxu0 %v493
    %v512 = vpop.f32.mrf.mxu0
    %v513 = vadd.f32 %v491, %v512
    %514 = vdwg.mxu0
    %vm515 = vcmask 188416
    %v516 = vsel %vm515, %v513, -inf
    %517 = vmax.xlane.f32.xlu0 %v516
    %v518 = vpop.xlane.xlu0 %517
    %v519 = vsub.f32 %v513, %v518
    %v520 = vmul.f32 %v519, 1.442695
    %v521 = vpow.pop %v520
    %v522 = vsel %vm515, %v521, 0.0
    %523 = vadd.xlane.f32.xlu0 %v522
    %v524 = vpop.xlane.xlu0 %523
    %v525 = vlog2.pop %v524
    %v526 = vmul.f32 %v525, 0.6931472
    %v527 = vadd.f32 %v526, %v518
    %v528 = vsub.f32 %v513, %v527
    %v529 = vsel %vm183, %v528, 0.0
    %v531 = vsel %vm215, %v490, 0.0
    %v532 = vsel %vm356, %v355, 0.0
    %v534 = vrot.slane %v531, 7
    %v537 = vrot.slane %v532, 6
    %v539 = vsel %vm170, %v529, %v534
    %v540 = vsel %vm172, %v539, %v537
    %v541 = vsel %vm174, %v540, 0.0
    %542 = vst [vmem:[%s10] sm:$0xff] %v541
    %s543 = scalar_lea.vmem [#allocation2], 1
    %v544 = vld [vmem:[%s543] ss:$8 sm:$0x3]
    %545 = vmatpush.msra.mxu0 0.0
    %546 = vmatpush.msra.mxu0 0.0
    %547 = vmatpush.msra.mxu0 0.0
    %548 = vmatpush.msra.mxu0 0.0
    %549 = vmatpush.msra.mxu0 0.0
    %550 = vmatpush.msra.mxu0 0.0
    %551 = vmatpush.msra.mxu0 0.0
    %552 = vmatpush.msra.mxu0 0.0
    %553 = vmatpush.msra.mxu0 0.0
    %554 = vmatpush.msra.mxu0 0.0
    %555 = vmatpush.msra.mxu0 0.0
    %556 = vmatpush.msra.mxu0 0.0
    %557 = vmatpush.msra.mxu0 %v270
    %558 = vmatpush.msra.mxu0 %v268
    %559 = vmatpush.msra.mxu0 %v266
    %560 = vmatpush.msra.mxu0 %v264
    %561 = vmatmul.f32.gmra.mxu0 %v493
    %v562 = vpop.f32.mrf.mxu0
    %v563 = vadd.f32 0.0, %v562
    %564 = vdwg.mxu0
    %565 = vmatpush.msra.mxu0 0.0
    %566 = vmatpush.msra.mxu0 0.0
    %567 = vmatpush.msra.mxu0 0.0
    %568 = vmatpush.msra.mxu0 0.0
    %569 = vmatpush.msra.mxu0 0.0
    %570 = vmatpush.msra.mxu0 0.0
    %571 = vmatpush.msra.mxu0 0.0
    %572 = vmatpush.msra.mxu0 0.0
    %573 = vmatpush.msra.mxu0 0.0
    %574 = vmatpush.msra.mxu0 0.0
    %575 = vmatpush.msra.mxu0 0.0
    %576 = vmatpush.msra.mxu0 0.0
    %577 = vmatpush.msra.mxu0 %v271
    %578 = vmatpush.msra.mxu0 %v269
    %579 = vmatpush.msra.mxu0 %v267
    %580 = vmatpush.msra.mxu0 %v265
    %581 = vmatmul.f32.gmra.mxu0 %v493
    %v582 = vpop.f32.mrf.mxu0
    %v583 = vadd.f32 0.0, %v582
    %584 = vdwg.mxu0
    %v585 = vadd.f32 %v544, %v563
    %v586 = vadd.f32 %v585, %v261
    %v587 = vsel %vm331, %v586, -inf
    %588 = vmax.xlane.f32.xlu0 %v587
    %v589 = vpop.xlane.xlu0 %588
    %v590 = vsub.f32 %v586, %v589
    %v591 = vmul.f32 %v590, 1.442695
    %v592 = vpow.pop %v591
    %v593 = vsel %vm331, %v592, 0.0
    %594 = vadd.xlane.f32.xlu0 %v593
    %v595 = vpop.xlane.xlu0 %594
    %v596 = vrcp.pop %v595
    %v597 = vmul.f32 %v595, %v596
    %v598 = vsub.f32 1.0, %v597
    %v599 = vmul.f32 %v596, %v598
    %v600 = vadd.f32 %v596, %v599
    %vm601 = vweird.f32 %v595
    %vm602 = vweird.f32 %v596
    %vm603 = vmor %vm601, %vm602
    %v604 = vsel %vm603, %v596, %v600
    %v605 = vand.u32 2147483647, %v595
    %vm606 = vcmp.eq.f32.partialorder %v605, 8.507059e+37
    %v607 = vand.u32 %v595, 2147483648
    %v608 = vor.u32 1.1754944e-38, %v607
    %v609 = vsel %vm606, %v608, %v604
    %v610 = vmul.f32 %v592, %v609
    %v612 = vsel %vm356, %v610, 0
    %614 = vmatpush.msra.mxu0 0.0
    %615 = vmatpush.msra.mxu0 0.0
    %616 = vmatpush.msra.mxu0 0.0
    %617 = vmatpush.msra.mxu0 0.0
    %618 = vmatpush.msra.mxu0 0.0
    %619 = vmatpush.msra.mxu0 0.0
    %620 = vmatpush.msra.mxu0 0.0
    %621 = vmatpush.msra.mxu0 0.0
    %622 = vmatpush.msra.mxu0 0.0
    %623 = vmatpush.msra.mxu0 0.0
    %624 = vmatpush.msra.mxu0 0.0
    %625 = vmatpush.msra.mxu0 0.0
    %626 = vmatpush.msra.mxu0 0.0
    %627 = vmatpush.msra.mxu0 0.0
    %628 = vmatpush.msra.mxu0 %v361
    %629 = vmatpush.msra.mxu0 %v262
    %630 = vmatmul.f32.gmra.mxu0 %v612
    %v631 = vpop.f32.mrf.mxu0
    %v632 = vadd.f32 0.0, %v631
    %633 = vdwg.mxu0
    %v635 = vsel %vm215, %v632, 0
    %637 = vmatpush.msra.mxu0 0.0
    %638 = vmatpush.msra.mxu0 0.0
    %639 = vmatpush.msra.mxu0 0.0
    %640 = vmatpush.msra.mxu0 0.0
    %641 = vmatpush.msra.mxu0 0.0
    %642 = vmatpush.msra.mxu0 0.0
    %643 = vmatpush.msra.mxu0 0.0
    %644 = vmatpush.msra.mxu0 0.0
    %645 = vmatpush.msra.mxu0 0.0
    %646 = vmatpush.msra.mxu0 0.0
    %647 = vmatpush.msra.mxu0 0.0
    %648 = vmatpush.msra.mxu0 0.0
    %649 = vmatpush.msra.mxu0 %v275
    %650 = vmatpush.msra.mxu0 %v274
    %651 = vmatpush.msra.mxu0 %v273
    %652 = vmatpush.msra.mxu0 %v272
    %653 = vmatmul.f32.gmra.mxu0 %v635
    %v654 = vpop.f32.mrf.mxu0
    %v655 = vadd.f32 0.0, %v654
    %656 = vdwg.mxu0
    %v658 = vrot.slane %v544, 1
    %v660 = vadd.f32 %v658, %v655
    %661 = vst [vmem:[#allocation1] sm:$0xff] %v261
    %s662 = scalar_lea.vmem [#allocation1], 1
    %v663 = vld [vmem:[%s662] ss:$9 sm:$0xff]
    %v665 = vadd.f32 %v660, %v663
    %v666 = vmax.f32 %v665, 0.0
    %v668 = vsel %vm215, %v666, 0
    %670 = vmatpush.msra.mxu0 0.0
    %671 = vmatpush.msra.mxu0 0.0
    %672 = vmatpush.msra.mxu0 0.0
    %673 = vmatpush.msra.mxu0 0.0
    %674 = vmatpush.msra.mxu0 0.0
    %675 = vmatpush.msra.mxu0 0.0
    %676 = vmatpush.msra.mxu0 0.0
    %677 = vmatpush.msra.mxu0 0.0
    %678 = vmatpush.msra.mxu0 0.0
    %679 = vmatpush.msra.mxu0 0.0
    %680 = vmatpush.msra.mxu0 0.0
    %681 = vmatpush.msra.mxu0 0.0
    %682 = vmatpush.msra.mxu0 %v279
    %683 = vmatpush.msra.mxu0 %v278
    %684 = vmatpush.msra.mxu0 %v277
    %685 = vmatpush.msra.mxu0 %v276
    %686 = vmatmul.f32.gmra.mxu0 %v668
    %v687 = vpop.f32.mrf.mxu0
    %v688 = vadd.f32 %v417, %v687
    %689 = vdwg.mxu0
    %v690 = vadd.f32 %v583, %v442
    %v691 = vadd.f32 %v688, %v690
    %v692 = vxor.u32 %v691, 2147483648
    %v693 = vmul.f32 %v692, 1.442695
    %v694 = vpow.pop %v693
    %v695 = vadd.f32 %v694, 1.0
    %v696 = vrcp.pop %v695
    %v697 = vmul.f32 %v695, %v696
    %v698 = vsub.f32 1.0, %v697
    %v699 = vmul.f32 %v696, %v698
    %v700 = vadd.f32 %v696, %v699
    %vm701 = vweird.f32 %v695
    %vm702 = vweird.f32 %v696
    %vm703 = vmor %vm701, %vm702
    %v704 = vsel %vm703, %v696, %v700
    %v705 = vand.u32 2147483647, %v695
    %vm706 = vcmp.eq.f32.partialorder %v705, 8.507059e+37
    %v707 = vand.u32 %v695, 2147483648
    %v708 = vor.u32 1.1754944e-38, %v707
    %v709 = vsel %vm706, %v708, %v704
    %v710 = vmul.f32 1.0, %v709
    %712 = vrot.lane.b32.xlu0 %v690, 64
    %v713 = vpop.permute.xlu0 %712
    %v715 = vmul.f32 %v710, %v713
    %717 = vrot.lane.b32.xlu0 %v715, 64
    %v718 = vpop.permute.xlu0 %717
    %v720 = vadd.f32 %v688, %v718
    %v721 = vtanh.pop %v720
    %v722 = vsub.f32 1.0, %v710
    %724 = vrot.lane.b32.xlu0 %v721, 96
    %v725 = vpop.permute.xlu0 %724
    %v727 = vmul.f32 %v722, %v725
    %v728 = vmul.f32 %v710, %v487
    %v729 = vadd.f32 %v727, %v728
    %731 = vrot.lane.b32.xlu0 %v729, 96
    %v732 = vpop.permute.xlu0 %731
    %v733 = vsel %vm215, %v732, 0
    %735 = vmatpush.msra.mxu0 0.0
    %736 = vmatpush.msra.mxu0 0.0
    %737 = vmatpush.msra.mxu0 0.0
    %738 = vmatpush.msra.mxu0 0.0
    %739 = vmatpush.msra.mxu0 0.0
    %740 = vmatpush.msra.mxu0 0.0
    %741 = vmatpush.msra.mxu0 0.0
    %742 = vmatpush.msra.mxu0 0.0
    %743 = vmatpush.msra.mxu0 0.0
    %744 = vmatpush.msra.mxu0 0.0
    %745 = vmatpush.msra.mxu0 0.0
    %746 = vmatpush.msra.mxu0 0.0
    %747 = vmatpush.msra.mxu0 %v283
    %748 = vmatpush.msra.mxu0 %v282
    %749 = vmatpush.msra.mxu0 %v281
    %750 = vmatpush.msra.mxu0 %v280
    %751 = vmatmul.f32.gmra.mxu0 %v733
    %v752 = vpop.f32.mrf.mxu0
    %v753 = vadd.f32 %v491, %v752
    %754 = vdwg.mxu0
    %v755 = vsel %vm515, %v753, -inf
    %756 = vmax.xlane.f32.xlu0 %v755
    %v757 = vpop.xlane.xlu0 %756
    %v758 = vsub.f32 %v753, %v757
    %v759 = vmul.f32 %v758, 1.442695
    %v760 = vpow.pop %v759
    %v761 = vsel %vm515, %v760, 0.0
    %762 = vadd.xlane.f32.xlu0 %v761
    %v763 = vpop.xlane.xlu0 %762
    %v764 = vlog2.pop %v763
    %v765 = vmul.f32 %v764, 0.6931472
    %v766 = vadd.f32 %v765, %v757
    %v767 = vsub.f32 %v753, %v766
    %v768 = vsel %vm183, %v767, 0.0
    %v770 = vsel %vm215, %v732, 0.0
    %v771 = vsel %vm356, %v610, 0.0
    %v773 = vrot.slane %v770, 7
    %v776 = vrot.slane %v771, 6
    %v778 = vsel %vm170, %v768, %v773
    %v779 = vsel %vm172, %v778, %v776
    %v780 = vsel %vm174, %v779, 0.0
    %s781 = scalar_lea.vmem %s10, 8
    %782 = vst [vmem:[%s781] sm:$0xff] %v780
    %s783 = scalar_lea.vmem [#allocation2], 2
    %v784 = vld [vmem:[%s783] ss:$8 sm:$0x3]
    %785 = vmatpush.msra.mxu0 0.0
    %786 = vmatpush.msra.mxu0 0.0
    %787 = vmatpush.msra.mxu0 0.0
    %788 = vmatpush.msra.mxu0 0.0
    %789 = vmatpush.msra.mxu0 0.0
    %790 = vmatpush.msra.mxu0 0.0
    %791 = vmatpush.msra.mxu0 0.0
    %792 = vmatpush.msra.mxu0 0.0
    %793 = vmatpush.msra.mxu0 0.0
    %794 = vmatpush.msra.mxu0 0.0
    %795 = vmatpush.msra.mxu0 0.0
    %796 = vmatpush.msra.mxu0 0.0
    %797 = vmatpush.msra.mxu0 %v270
    %798 = vmatpush.msra.mxu0 %v268
    %799 = vmatpush.msra.mxu0 %v266
    %800 = vmatpush.msra.mxu0 %v264
    %801 = vmatmul.f32.gmra.mxu0 %v733
    %v802 = vpop.f32.mrf.mxu0
    %v803 = vadd.f32 0.0, %v802
    %804 = vdwg.mxu0
    %805 = vmatpush.msra.mxu0 0.0
    %806 = vmatpush.msra.mxu0 0.0
    %807 = vmatpush.msra.mxu0 0.0
    %808 = vmatpush.msra.mxu0 0.0
    %809 = vmatpush.msra.mxu0 0.0
    %810 = vmatpush.msra.mxu0 0.0
    %811 = vmatpush.msra.mxu0 0.0
    %812 = vmatpush.msra.mxu0 0.0
    %813 = vmatpush.msra.mxu0 0.0
    %814 = vmatpush.msra.mxu0 0.0
    %815 = vmatpush.msra.mxu0 0.0
    %816 = vmatpush.msra.mxu0 0.0
    %817 = vmatpush.msra.mxu0 %v271
    %818 = vmatpush.msra.mxu0 %v269
    %819 = vmatpush.msra.mxu0 %v267
    %820 = vmatpush.msra.mxu0 %v265
    %821 = vmatmul.f32.gmra.mxu0 %v733
    %v822 = vpop.f32.mrf.mxu0
    %v823 = vadd.f32 0.0, %v822
    %824 = vdwg.mxu0
    %v825 = vadd.f32 %v784, %v803
    %v826 = vadd.f32 %v825, %v261
    %v827 = vsel %vm331, %v826, -inf
    %828 = vmax.xlane.f32.xlu0 %v827
    %v829 = vpop.xlane.xlu0 %828
    %v830 = vsub.f32 %v826, %v829
    %v831 = vmul.f32 %v830, 1.442695
    %v832 = vpow.pop %v831
    %v833 = vsel %vm331, %v832, 0.0
    %834 = vadd.xlane.f32.xlu0 %v833
    %v835 = vpop.xlane.xlu0 %834
    %v836 = vrcp.pop %v835
    %v837 = vmul.f32 %v835, %v836
    %v838 = vsub.f32 1.0, %v837
    %v839 = vmul.f32 %v836, %v838
    %v840 = vadd.f32 %v836, %v839
    %vm841 = vweird.f32 %v835
    %vm842 = vweird.f32 %v836
    %vm843 = vmor %vm841, %vm842
    %v844 = vsel %vm843, %v836, %v840
    %v845 = vand.u32 2147483647, %v835
    %vm846 = vcmp.eq.f32.partialorder %v845, 8.507059e+37
    %v847 = vand.u32 %v835, 2147483648
    %v848 = vor.u32 1.1754944e-38, %v847
    %v849 = vsel %vm846, %v848, %v844
    %v850 = vmul.f32 %v832, %v849
    %v852 = vsel %vm356, %v850, 0
    %854 = vmatpush.msra.mxu0 0.0
    %855 = vmatpush.msra.mxu0 0.0
    %856 = vmatpush.msra.mxu0 0.0
    %857 = vmatpush.msra.mxu0 0.0
    %858 = vmatpush.msra.mxu0 0.0
    %859 = vmatpush.msra.mxu0 0.0
    %860 = vmatpush.msra.mxu0 0.0
    %861 = vmatpush.msra.mxu0 0.0
    %862 = vmatpush.msra.mxu0 0.0
    %863 = vmatpush.msra.mxu0 0.0
    %864 = vmatpush.msra.mxu0 0.0
    %865 = vmatpush.msra.mxu0 0.0
    %866 = vmatpush.msra.mxu0 0.0
    %867 = vmatpush.msra.mxu0 0.0
    %868 = vmatpush.msra.mxu0 %v361
    %869 = vmatpush.msra.mxu0 %v262
    %870 = vmatmul.f32.gmra.mxu0 %v852
    %v871 = vpop.f32.mrf.mxu0
    %v872 = vadd.f32 0.0, %v871
    %873 = vdwg.mxu0
    %v875 = vsel %vm215, %v872, 0
    %877 = vmatpush.msra.mxu0 0.0
    %878 = vmatpush.msra.mxu0 0.0
    %879 = vmatpush.msra.mxu0 0.0
    %880 = vmatpush.msra.mxu0 0.0
    %881 = vmatpush.msra.mxu0 0.0
    %882 = vmatpush.msra.mxu0 0.0
    %883 = vmatpush.msra.mxu0 0.0
    %884 = vmatpush.msra.mxu0 0.0
    %885 = vmatpush.msra.mxu0 0.0
    %886 = vmatpush.msra.mxu0 0.0
    %887 = vmatpush.msra.mxu0 0.0
    %888 = vmatpush.msra.mxu0 0.0
    %889 = vmatpush.msra.mxu0 %v275
    %890 = vmatpush.msra.mxu0 %v274
    %891 = vmatpush.msra.mxu0 %v273
    %892 = vmatpush.msra.mxu0 %v272
    %893 = vmatmul.f32.gmra.mxu0 %v875
    %v894 = vpop.f32.mrf.mxu0
    %v895 = vadd.f32 0.0, %v894
    %896 = vdwg.mxu0
    %v898 = vrot.slane %v784, 1
    %v900 = vadd.f32 %v898, %v895
    %901 = vst [vmem:[#allocation1] sm:$0xff] %v261
    %s902 = scalar_lea.vmem [#allocation1], 1
    %v903 = vld [vmem:[%s902] ss:$9 sm:$0xff]
    %v905 = vadd.f32 %v900, %v903
    %v906 = vmax.f32 %v905, 0.0
    %v908 = vsel %vm215, %v906, 0
    %910 = vmatpush.msra.mxu0 0.0
    %911 = vmatpush.msra.mxu0 0.0
    %912 = vmatpush.msra.mxu0 0.0
    %913 = vmatpush.msra.mxu0 0.0
    %914 = vmatpush.msra.mxu0 0.0
    %915 = vmatpush.msra.mxu0 0.0
    %916 = vmatpush.msra.mxu0 0.0
    %917 = vmatpush.msra.mxu0 0.0
    %918 = vmatpush.msra.mxu0 0.0
    %919 = vmatpush.msra.mxu0 0.0
    %920 = vmatpush.msra.mxu0 0.0
    %921 = vmatpush.msra.mxu0 0.0
    %922 = vmatpush.msra.mxu0 %v279
    %923 = vmatpush.msra.mxu0 %v278
    %924 = vmatpush.msra.mxu0 %v277
    %925 = vmatpush.msra.mxu0 %v276
    %926 = vmatmul.f32.gmra.mxu0 %v908
    %v927 = vpop.f32.mrf.mxu0
    %v928 = vadd.f32 %v417, %v927
    %929 = vdwg.mxu0
    %v930 = vadd.f32 %v823, %v442
    %v931 = vadd.f32 %v928, %v930
    %v932 = vxor.u32 %v931, 2147483648
    %v933 = vmul.f32 %v932, 1.442695
    %v934 = vpow.pop %v933
    %v935 = vadd.f32 %v934, 1.0
    %v936 = vrcp.pop %v935
    %v937 = vmul.f32 %v935, %v936
    %v938 = vsub.f32 1.0, %v937
    %v939 = vmul.f32 %v936, %v938
    %v940 = vadd.f32 %v936, %v939
    %vm941 = vweird.f32 %v935
    %vm942 = vweird.f32 %v936
    %vm943 = vmor %vm941, %vm942
    %v944 = vsel %vm943, %v936, %v940
    %v945 = vand.u32 2147483647, %v935
    %vm946 = vcmp.eq.f32.partialorder %v945, 8.507059e+37
    %v947 = vand.u32 %v935, 2147483648
    %v948 = vor.u32 1.1754944e-38, %v947
    %v949 = vsel %vm946, %v948, %v944
    %v950 = vmul.f32 1.0, %v949
    %952 = vrot.lane.b32.xlu0 %v930, 64
    %v953 = vpop.permute.xlu0 %952
    %v955 = vmul.f32 %v950, %v953
    %957 = vrot.lane.b32.xlu0 %v955, 64
    %v958 = vpop.permute.xlu0 %957
    %v960 = vadd.f32 %v928, %v958
    %v961 = vtanh.pop %v960
    %v962 = vsub.f32 1.0, %v950
    %964 = vrot.lane.b32.xlu0 %v961, 96
    %v965 = vpop.permute.xlu0 %964
    %v967 = vmul.f32 %v962, %v965
    %v968 = vmul.f32 %v950, %v729
    %v969 = vadd.f32 %v967, %v968
    %971 = vrot.lane.b32.xlu0 %v969, 96
    %v972 = vpop.permute.xlu0 %971
    %v973 = vsel %vm215, %v972, 0
    %975 = vmatpush.msra.mxu0 0.0
    %976 = vmatpush.msra.mxu0 0.0
    %977 = vmatpush.msra.mxu0 0.0
    %978 = vmatpush.msra.mxu0 0.0
    %979 = vmatpush.msra.mxu0 0.0
    %980 = vmatpush.msra.mxu0 0.0
    %981 = vmatpush.msra.mxu0 0.0
    %982 = vmatpush.msra.mxu0 0.0
    %983 = vmatpush.msra.mxu0 0.0
    %984 = vmatpush.msra.mxu0 0.0
    %985 = vmatpush.msra.mxu0 0.0
    %986 = vmatpush.msra.mxu0 0.0
    %987 = vmatpush.msra.mxu0 %v283
    %988 = vmatpush.msra.mxu0 %v282
    %989 = vmatpush.msra.mxu0 %v281
    %990 = vmatpush.msra.mxu0 %v280
    %991 = vmatmul.f32.gmra.mxu0 %v973
    %v992 = vpop.f32.mrf.mxu0
    %v993 = vadd.f32 %v491, %v992
    %994 = vdwg.mxu0
    %v995 = vsel %vm515, %v993, -inf
    %996 = vmax.xlane.f32.xlu0 %v995
    %v997 = vpop.xlane.xlu0 %996
    %v998 = vsub.f32 %v993, %v997
    %v999 = vmul.f32 %v998, 1.442695
    %v1000 = vpow.pop %v999
    %v1001 = vsel %vm515, %v1000, 0.0
    %1002 = vadd.xlane.f32.xlu0 %v1001
    %v1003 = vpop.xlane.xlu0 %1002
    %v1004 = vlog2.pop %v1003
    %v1005 = vmul.f32 %v1004, 0.6931472
    %v1006 = vadd.f32 %v1005, %v997
    %v1007 = vsub.f32 %v993, %v1006
    %v1008 = vsel %vm183, %v1007, 0.0
    %v1010 = vsel %vm215, %v972, 0.0
    %v1011 = vsel %vm356, %v850, 0.0
    %v1013 = vrot.slane %v1010, 7
    %v1016 = vrot.slane %v1011, 6
    %v1018 = vsel %vm170, %v1008, %v1013
    %v1019 = vsel %vm172, %v1018, %v1016
    %v1020 = vsel %vm174, %v1019, 0.0
    %s1021 = scalar_lea.vmem %s10, 16
    %1022 = vst [vmem:[%s1021] sm:$0xff] %v1020
    %s1023 = scalar_lea.vmem [#allocation2], 3
    %v1024 = vld [vmem:[%s1023] ss:$8 sm:$0x3]
    %1025 = vmatpush.msra.mxu0 0.0
    %1026 = vmatpush.msra.mxu0 0.0
    %1027 = vmatpush.msra.mxu0 0.0
    %1028 = vmatpush.msra.mxu0 0.0
    %1029 = vmatpush.msra.mxu0 0.0
    %1030 = vmatpush.msra.mxu0 0.0
    %1031 = vmatpush.msra.mxu0 0.0
    %1032 = vmatpush.msra.mxu0 0.0
    %1033 = vmatpush.msra.mxu0 0.0
    %1034 = vmatpush.msra.mxu0 0.0
    %1035 = vmatpush.msra.mxu0 0.0
    %1036 = vmatpush.msra.mxu0 0.0
    %1037 = vmatpush.msra.mxu0 %v270
    %1038 = vmatpush.msra.mxu0 %v268
    %1039 = vmatpush.msra.mxu0 %v266
    %1040 = vmatpush.msra.mxu0 %v264
    %1041 = vmatmul.f32.gmra.mxu0 %v973
    %v1042 = vpop.f32.mrf.mxu0
    %v1043 = vadd.f32 0.0, %v1042
    %1044 = vdwg.mxu0
    %1045 = vmatpush.msra.mxu0 0.0
    %1046 = vmatpush.msra.mxu0 0.0
    %1047 = vmatpush.msra.mxu0 0.0
    %1048 = vmatpush.msra.mxu0 0.0
    %1049 = vmatpush.msra.mxu0 0.0
    %1050 = vmatpush.msra.mxu0 0.0
    %1051 = vmatpush.msra.mxu0 0.0
    %1052 = vmatpush.msra.mxu0 0.0
    %1053 = vmatpush.msra.mxu0 0.0
    %1054 = vmatpush.msra.mxu0 0.0
    %1055 = vmatpush.msra.mxu0 0.0
    %1056 = vmatpush.msra.mxu0 0.0
    %1057 = vmatpush.msra.mxu0 %v271
    %1058 = vmatpush.msra.mxu0 %v269
    %1059 = vmatpush.msra.mxu0 %v267
    %1060 = vmatpush.msra.mxu0 %v265
    %1061 = vmatmul.f32.gmra.mxu0 %v973
    %v1062 = vpop.f32.mrf.mxu0
    %v1063 = vadd.f32 0.0, %v1062
    %1064 = vdwg.mxu0
    %v1065 = vadd.f32 %v1024, %v1043
    %v1066 = vadd.f32 %v1065, %v261
    %v1067 = vsel %vm331, %v1066, -inf
    %1068 = vmax.xlane.f32.xlu0 %v1067
    %v1069 = vpop.xlane.xlu0 %1068
    %v1070 = vsub.f32 %v1066, %v1069
    %v1071 = vmul.f32 %v1070, 1.442695
    %v1072 = vpow.pop %v1071
    %v1073 = vsel %vm331, %v1072, 0.0
    %1074 = vadd.xlane.f32.xlu0 %v1073
    %v1075 = vpop.xlane.xlu0 %1074
    %v1076 = vrcp.pop %v1075
    %v1077 = vmul.f32 %v1075, %v1076
    %v1078 = vsub.f32 1.0, %v1077
    %v1079 = vmul.f32 %v1076, %v1078
    %v1080 = vadd.f32 %v1076, %v1079
    %vm1081 = vweird.f32 %v1075
    %vm1082 = vweird.f32 %v1076
    %vm1083 = vmor %vm1081, %vm1082
    %v1084 = vsel %vm1083, %v1076, %v1080
    %v1085 = vand.u32 2147483647, %v1075
    %vm1086 = vcmp.eq.f32.partialorder %v1085, 8.507059e+37
    %v1087 = vand.u32 %v1075, 2147483648
    %v1088 = vor.u32 1.1754944e-38, %v1087
    %v1089 = vsel %vm1086, %v1088, %v1084
    %v1090 = vmul.f32 %v1072, %v1089
    %v1092 = vsel %vm356, %v1090, 0
    %1094 = vmatpush.msra.mxu0 0.0
    %1095 = vmatpush.msra.mxu0 0.0
    %1096 = vmatpush.msra.mxu0 0.0
    %1097 = vmatpush.msra.mxu0 0.0
    %1098 = vmatpush.msra.mxu0 0.0
    %1099 = vmatpush.msra.mxu0 0.0
    %1100 = vmatpush.msra.mxu0 0.0
    %1101 = vmatpush.msra.mxu0 0.0
    %1102 = vmatpush.msra.mxu0 0.0
    %1103 = vmatpush.msra.mxu0 0.0
    %1104 = vmatpush.msra.mxu0 0.0
    %1105 = vmatpush.msra.mxu0 0.0
    %1106 = vmatpush.msra.mxu0 0.0
    %1107 = vmatpush.msra.mxu0 0.0
    %1108 = vmatpush.msra.mxu0 %v361
    %1109 = vmatpush.msra.mxu0 %v262
    %1110 = vmatmul.f32.gmra.mxu0 %v1092
    %v1111 = vpop.f32.mrf.mxu0
    %v1112 = vadd.f32 0.0, %v1111
    %1113 = vdwg.mxu0
    %v1115 = vsel %vm215, %v1112, 0
    %1117 = vmatpush.msra.mxu0 0.0
    %1118 = vmatpush.msra.mxu0 0.0
    %1119 = vmatpush.msra.mxu0 0.0
    %1120 = vmatpush.msra.mxu0 0.0
    %1121 = vmatpush.msra.mxu0 0.0
    %1122 = vmatpush.msra.mxu0 0.0
    %1123 = vmatpush.msra.mxu0 0.0
    %1124 = vmatpush.msra.mxu0 0.0
    %1125 = vmatpush.msra.mxu0 0.0
    %1126 = vmatpush.msra.mxu0 0.0
    %1127 = vmatpush.msra.mxu0 0.0
    %1128 = vmatpush.msra.mxu0 0.0
    %1129 = vmatpush.msra.mxu0 %v275
    %1130 = vmatpush.msra.mxu0 %v274
    %1131 = vmatpush.msra.mxu0 %v273
    %1132 = vmatpush.msra.mxu0 %v272
    %1133 = vmatmul.f32.gmra.mxu0 %v1115
    %v1134 = vpop.f32.mrf.mxu0
    %v1135 = vadd.f32 0.0, %v1134
    %1136 = vdwg.mxu0
    %v1138 = vrot.slane %v1024, 1
    %v1140 = vadd.f32 %v1138, %v1135
    %1141 = vst [vmem:[#allocation1] sm:$0xff] %v261
    %s1142 = scalar_lea.vmem [#allocation1], 1
    %v1143 = vld [vmem:[%s1142] ss:$9 sm:$0xff]
    %v1145 = vadd.f32 %v1140, %v1143
    %v1146 = vmax.f32 %v1145, 0.0
    %v1148 = vsel %vm215, %v1146, 0
    %1150 = vmatpush.msra.mxu0 0.0
    %1151 = vmatpush.msra.mxu0 0.0
    %1152 = vmatpush.msra.mxu0 0.0
    %1153 = vmatpush.msra.mxu0 0.0
    %1154 = vmatpush.msra.mxu0 0.0
    %1155 = vmatpush.msra.mxu0 0.0
    %1156 = vmatpush.msra.mxu0 0.0
    %1157 = vmatpush.msra.mxu0 0.0
    %1158 = vmatpush.msra.mxu0 0.0
    %1159 = vmatpush.msra.mxu0 0.0
    %1160 = vmatpush.msra.mxu0 0.0
    %1161 = vmatpush.msra.mxu0 0.0
    %1162 = vmatpush.msra.mxu0 %v279
    %1163 = vmatpush.msra.mxu0 %v278
    %1164 = vmatpush.msra.mxu0 %v277
    %1165 = vmatpush.msra.mxu0 %v276
    %1166 = vmatmul.f32.gmra.mxu0 %v1148
    %v1167 = vpop.f32.mrf.mxu0
    %v1168 = vadd.f32 %v417, %v1167
    %1169 = vdwg.mxu0
    %v1170 = vadd.f32 %v1063, %v442
    %v1171 = vadd.f32 %v1168, %v1170
    %v1172 = vxor.u32 %v1171, 2147483648
    %v1173 = vmul.f32 %v1172, 1.442695
    %v1174 = vpow.pop %v1173
    %v1175 = vadd.f32 %v1174, 1.0
    %v1176 = vrcp.pop %v1175
    %v1177 = vmul.f32 %v1175, %v1176
    %v1178 = vsub.f32 1.0, %v1177
    %v1179 = vmul.f32 %v1176, %v1178
    %v1180 = vadd.f32 %v1176, %v1179
    %vm1181 = vweird.f32 %v1175
    %vm1182 = vweird.f32 %v1176
    %vm1183 = vmor %vm1181, %vm1182
    %v1184 = vsel %vm1183, %v1176, %v1180
    %v1185 = vand.u32 2147483647, %v1175
    %vm1186 = vcmp.eq.f32.partialorder %v1185, 8.507059e+37
    %v1187 = vand.u32 %v1175, 2147483648
    %v1188 = vor.u32 1.1754944e-38, %v1187
    %v1189 = vsel %vm1186, %v1188, %v1184
    %v1190 = vmul.f32 1.0, %v1189
    %1192 = vrot.lane.b32.xlu0 %v1170, 64
    %v1193 = vpop.permute.xlu0 %1192
    %v1195 = vmul.f32 %v1190, %v1193
    %1197 = vrot.lane.b32.xlu0 %v1195, 64
    %v1198 = vpop.permute.xlu0 %1197
    %v1200 = vadd.f32 %v1168, %v1198
    %v1201 = vtanh.pop %v1200
    %v1202 = vsub.f32 1.0, %v1190
    %1204 = vrot.lane.b32.xlu0 %v1201, 96
    %v1205 = vpop.permute.xlu0 %1204
    %v1207 = vmul.f32 %v1202, %v1205
    %v1208 = vmul.f32 %v1190, %v969
    %v1209 = vadd.f32 %v1207, %v1208
    %1211 = vrot.lane.b32.xlu0 %v1209, 96
    %v1212 = vpop.permute.xlu0 %1211
    %v1213 = vsel %vm215, %v1212, 0
    %1215 = vmatpush.msra.mxu0 0.0
    %1216 = vmatpush.msra.mxu0 0.0
    %1217 = vmatpush.msra.mxu0 0.0
    %1218 = vmatpush.msra.mxu0 0.0
    %1219 = vmatpush.msra.mxu0 0.0
    %1220 = vmatpush.msra.mxu0 0.0
    %1221 = vmatpush.msra.mxu0 0.0
    %1222 = vmatpush.msra.mxu0 0.0
    %1223 = vmatpush.msra.mxu0 0.0
    %1224 = vmatpush.msra.mxu0 0.0
    %1225 = vmatpush.msra.mxu0 0.0
    %1226 = vmatpush.msra.mxu0 0.0
    %1227 = vmatpush.msra.mxu0 %v283
    %1228 = vmatpush.msra.mxu0 %v282
    %1229 = vmatpush.msra.mxu0 %v281
    %1230 = vmatpush.msra.mxu0 %v280
    %1231 = vmatmul.f32.gmra.mxu0 %v1213
    %v1232 = vpop.f32.mrf.mxu0
    %v1233 = vadd.f32 %v491, %v1232
    %1234 = vdwg.mxu0
    %v1235 = vsel %vm515, %v1233, -inf
    %1236 = vmax.xlane.f32.xlu0 %v1235
    %v1237 = vpop.xlane.xlu0 %1236
    %v1238 = vsub.f32 %v1233, %v1237
    %v1239 = vmul.f32 %v1238, 1.442695
    %v1240 = vpow.pop %v1239
    %v1241 = vsel %vm515, %v1240, 0.0
    %1242 = vadd.xlane.f32.xlu0 %v1241
    %v1243 = vpop.xlane.xlu0 %1242
    %v1244 = vlog2.pop %v1243
    %v1245 = vmul.f32 %v1244, 0.6931472
    %v1246 = vadd.f32 %v1245, %v1237
    %v1247 = vsub.f32 %v1233, %v1246
    %v1248 = vsel %vm183, %v1247, 0.0
    %v1250 = vsel %vm215, %v1212, 0.0
    %v1251 = vsel %vm356, %v1090, 0.0
    %v1253 = vrot.slane %v1250, 7
    %v1256 = vrot.slane %v1251, 6
    %v1258 = vsel %vm170, %v1248, %v1253
    %v1259 = vsel %vm172, %v1258, %v1256
    %v1260 = vsel %vm174, %v1259, 0.0
    %s1261 = scalar_lea.vmem %s10, 24
    %1262 = vst [vmem:[%s1261] sm:$0xff] %v1260
    %s1263 = scalar_lea.vmem [#allocation2], 4
    %v1264 = vld [vmem:[%s1263] ss:$8 sm:$0x3]
    %1265 = vmatpush.msra.mxu0 0.0
    %1266 = vmatpush.msra.mxu0 0.0
    %1267 = vmatpush.msra.mxu0 0.0
    %1268 = vmatpush.msra.mxu0 0.0
    %1269 = vmatpush.msra.mxu0 0.0
    %1270 = vmatpush.msra.mxu0 0.0
    %1271 = vmatpush.msra.mxu0 0.0
    %1272 = vmatpush.msra.mxu0 0.0
    %1273 = vmatpush.msra.mxu0 0.0
    %1274 = vmatpush.msra.mxu0 0.0
    %1275 = vmatpush.msra.mxu0 0.0
    %1276 = vmatpush.msra.mxu0 0.0
    %1277 = vmatpush.msra.mxu0 %v270
    %1278 = vmatpush.msra.mxu0 %v268
    %1279 = vmatpush.msra.mxu0 %v266
    %1280 = vmatpush.msra.mxu0 %v264
    %1281 = vmatmul.f32.gmra.mxu0 %v1213
    %v1282 = vpop.f32.mrf.mxu0
    %v1283 = vadd.f32 0.0, %v1282
    %1284 = vdwg.mxu0
    %1285 = vmatpush.msra.mxu0 0.0
    %1286 = vmatpush.msra.mxu0 0.0
    %1287 = vmatpush.msra.mxu0 0.0
    %1288 = vmatpush.msra.mxu0 0.0
    %1289 = vmatpush.msra.mxu0 0.0
    %1290 = vmatpush.msra.mxu0 0.0
    %1291 = vmatpush.msra.mxu0 0.0
    %1292 = vmatpush.msra.mxu0 0.0
    %1293 = vmatpush.msra.mxu0 0.0
    %1294 = vmatpush.msra.mxu0 0.0
    %1295 = vmatpush.msra.mxu0 0.0
    %1296 = vmatpush.msra.mxu0 0.0
    %1297 = vmatpush.msra.mxu0 %v271
    %1298 = vmatpush.msra.mxu0 %v269
    %1299 = vmatpush.msra.mxu0 %v267
    %1300 = vmatpush.msra.mxu0 %v265
    %1301 = vmatmul.f32.gmra.mxu0 %v1213
    %v1302 = vpop.f32.mrf.mxu0
    %v1303 = vadd.f32 0.0, %v1302
    %1304 = vdwg.mxu0
    %v1305 = vadd.f32 %v1264, %v1283
    %v1306 = vadd.f32 %v1305, %v261
    %v1307 = vsel %vm331, %v1306, -inf
    %1308 = vmax.xlane.f32.xlu0 %v1307
    %v1309 = vpop.xlane.xlu0 %1308
    %v1310 = vsub.f32 %v1306, %v1309
    %v1311 = vmul.f32 %v1310, 1.442695
    %v1312 = vpow.pop %v1311
    %v1313 = vsel %vm331, %v1312, 0.0
    %1314 = vadd.xlane.f32.xlu0 %v1313
    %v1315 = vpop.xlane.xlu0 %1314
    %v1316 = vrcp.pop %v1315
    %v1317 = vmul.f32 %v1315, %v1316
    %v1318 = vsub.f32 1.0, %v1317
    %v1319 = vmul.f32 %v1316, %v1318
    %v1320 = vadd.f32 %v1316, %v1319
    %vm1321 = vweird.f32 %v1315
    %vm1322 = vweird.f32 %v1316
    %vm1323 = vmor %vm1321, %vm1322
    %v1324 = vsel %vm1323, %v1316, %v1320
    %v1325 = vand.u32 2147483647, %v1315
    %vm1326 = vcmp.eq.f32.partialorder %v1325, 8.507059e+37
    %v1327 = vand.u32 %v1315, 2147483648
    %v1328 = vor.u32 1.1754944e-38, %v1327
    %v1329 = vsel %vm1326, %v1328, %v1324
    %v1330 = vmul.f32 %v1312, %v1329
    %v1332 = vsel %vm356, %v1330, 0
    %1334 = vmatpush.msra.mxu0 0.0
    %1335 = vmatpush.msra.mxu0 0.0
    %1336 = vmatpush.msra.mxu0 0.0
    %1337 = vmatpush.msra.mxu0 0.0
    %1338 = vmatpush.msra.mxu0 0.0
    %1339 = vmatpush.msra.mxu0 0.0
    %1340 = vmatpush.msra.mxu0 0.0
    %1341 = vmatpush.msra.mxu0 0.0
    %1342 = vmatpush.msra.mxu0 0.0
    %1343 = vmatpush.msra.mxu0 0.0
    %1344 = vmatpush.msra.mxu0 0.0
    %1345 = vmatpush.msra.mxu0 0.0
    %1346 = vmatpush.msra.mxu0 0.0
    %1347 = vmatpush.msra.mxu0 0.0
    %1348 = vmatpush.msra.mxu0 %v361
    %1349 = vmatpush.msra.mxu0 %v262
    %1350 = vmatmul.f32.gmra.mxu0 %v1332
    %v1351 = vpop.f32.mrf.mxu0
    %v1352 = vadd.f32 0.0, %v1351
    %1353 = vdwg.mxu0
    %v1355 = vsel %vm215, %v1352, 0
    %1357 = vmatpush.msra.mxu0 0.0
    %1358 = vmatpush.msra.mxu0 0.0
    %1359 = vmatpush.msra.mxu0 0.0
    %1360 = vmatpush.msra.mxu0 0.0
    %1361 = vmatpush.msra.mxu0 0.0
    %1362 = vmatpush.msra.mxu0 0.0
    %1363 = vmatpush.msra.mxu0 0.0
    %1364 = vmatpush.msra.mxu0 0.0
    %1365 = vmatpush.msra.mxu0 0.0
    %1366 = vmatpush.msra.mxu0 0.0
    %1367 = vmatpush.msra.mxu0 0.0
    %1368 = vmatpush.msra.mxu0 0.0
    %1369 = vmatpush.msra.mxu0 %v275
    %1370 = vmatpush.msra.mxu0 %v274
    %1371 = vmatpush.msra.mxu0 %v273
    %1372 = vmatpush.msra.mxu0 %v272
    %1373 = vmatmul.f32.gmra.mxu0 %v1355
    %v1374 = vpop.f32.mrf.mxu0
    %v1375 = vadd.f32 0.0, %v1374
    %1376 = vdwg.mxu0
    %v1378 = vrot.slane %v1264, 1
    %v1380 = vadd.f32 %v1378, %v1375
    %1381 = vst [vmem:[#allocation1] sm:$0xff] %v261
    %s1382 = scalar_lea.vmem [#allocation1], 1
    %v1383 = vld [vmem:[%s1382] ss:$9 sm:$0xff]
    %v1385 = vadd.f32 %v1380, %v1383
    %v1386 = vmax.f32 %v1385, 0.0
    %v1388 = vsel %vm215, %v1386, 0
    %1390 = vmatpush.msra.mxu0 0.0
    %1391 = vmatpush.msra.mxu0 0.0
    %1392 = vmatpush.msra.mxu0 0.0
    %1393 = vmatpush.msra.mxu0 0.0
    %1394 = vmatpush.msra.mxu0 0.0
    %1395 = vmatpush.msra.mxu0 0.0
    %1396 = vmatpush.msra.mxu0 0.0
    %1397 = vmatpush.msra.mxu0 0.0
    %1398 = vmatpush.msra.mxu0 0.0
    %1399 = vmatpush.msra.mxu0 0.0
    %1400 = vmatpush.msra.mxu0 0.0
    %1401 = vmatpush.msra.mxu0 0.0
    %1402 = vmatpush.msra.mxu0 %v279
    %1403 = vmatpush.msra.mxu0 %v278
    %1404 = vmatpush.msra.mxu0 %v277
    %1405 = vmatpush.msra.mxu0 %v276
    %1406 = vmatmul.f32.gmra.mxu0 %v1388
    %v1407 = vpop.f32.mrf.mxu0
    %v1408 = vadd.f32 %v417, %v1407
    %1409 = vdwg.mxu0
    %v1410 = vadd.f32 %v1303, %v442
    %v1411 = vadd.f32 %v1408, %v1410
    %v1412 = vxor.u32 %v1411, 2147483648
    %v1413 = vmul.f32 %v1412, 1.442695
    %v1414 = vpow.pop %v1413
    %v1415 = vadd.f32 %v1414, 1.0
    %v1416 = vrcp.pop %v1415
    %v1417 = vmul.f32 %v1415, %v1416
    %v1418 = vsub.f32 1.0, %v1417
    %v1419 = vmul.f32 %v1416, %v1418
    %v1420 = vadd.f32 %v1416, %v1419
    %vm1421 = vweird.f32 %v1415
    %vm1422 = vweird.f32 %v1416
    %vm1423 = vmor %vm1421, %vm1422
    %v1424 = vsel %vm1423, %v1416, %v1420
    %v1425 = vand.u32 2147483647, %v1415
    %vm1426 = vcmp.eq.f32.partialorder %v1425, 8.507059e+37
    %v1427 = vand.u32 %v1415, 2147483648
    %v1428 = vor.u32 1.1754944e-38, %v1427
    %v1429 = vsel %vm1426, %v1428, %v1424
    %v1430 = vmul.f32 1.0, %v1429
    %1432 = vrot.lane.b32.xlu0 %v1410, 64
    %v1433 = vpop.permute.xlu0 %1432
    %v1435 = vmul.f32 %v1430, %v1433
    %1437 = vrot.lane.b32.xlu0 %v1435, 64
    %v1438 = vpop.permute.xlu0 %1437
    %v1440 = vadd.f32 %v1408, %v1438
    %v1441 = vtanh.pop %v1440
    %v1442 = vsub.f32 1.0, %v1430
    %1444 = vrot.lane.b32.xlu0 %v1441, 96
    %v1445 = vpop.permute.xlu0 %1444
    %v1447 = vmul.f32 %v1442, %v1445
    %v1448 = vmul.f32 %v1430, %v1209
    %v1449 = vadd.f32 %v1447, %v1448
    %1451 = vrot.lane.b32.xlu0 %v1449, 96
    %v1452 = vpop.permute.xlu0 %1451
    %v1453 = vsel %vm215, %v1452, 0
    %1455 = vmatpush.msra.mxu0 0.0
    %1456 = vmatpush.msra.mxu0 0.0
    %1457 = vmatpush.msra.mxu0 0.0
    %1458 = vmatpush.msra.mxu0 0.0
    %1459 = vmatpush.msra.mxu0 0.0
    %1460 = vmatpush.msra.mxu0 0.0
    %1461 = vmatpush.msra.mxu0 0.0
    %1462 = vmatpush.msra.mxu0 0.0
    %1463 = vmatpush.msra.mxu0 0.0
    %1464 = vmatpush.msra.mxu0 0.0
    %1465 = vmatpush.msra.mxu0 0.0
    %1466 = vmatpush.msra.mxu0 0.0
    %1467 = vmatpush.msra.mxu0 %v283
    %1468 = vmatpush.msra.mxu0 %v282
    %1469 = vmatpush.msra.mxu0 %v281
    %1470 = vmatpush.msra.mxu0 %v280
    %1471 = vmatmul.f32.gmra.mxu0 %v1453
    %v1472 = vpop.f32.mrf.mxu0
    %v1473 = vadd.f32 %v491, %v1472
    %1474 = vdwg.mxu0
    %v1475 = vsel %vm515, %v1473, -inf
    %1476 = vmax.xlane.f32.xlu0 %v1475
    %v1477 = vpop.xlane.xlu0 %1476
    %v1478 = vsub.f32 %v1473, %v1477
    %v1479 = vmul.f32 %v1478, 1.442695
    %v1480 = vpow.pop %v1479
    %v1481 = vsel %vm515, %v1480, 0.0
    %1482 = vadd.xlane.f32.xlu0 %v1481
    %v1483 = vpop.xlane.xlu0 %1482
    %v1484 = vlog2.pop %v1483
    %v1485 = vmul.f32 %v1484, 0.6931472
    %v1486 = vadd.f32 %v1485, %v1477
    %v1487 = vsub.f32 %v1473, %v1486
    %v1488 = vsel %vm183, %v1487, 0.0
    %v1490 = vsel %vm215, %v1452, 0.0
    %v1491 = vsel %vm356, %v1330, 0.0
    %v1493 = vrot.slane %v1490, 7
    %v1496 = vrot.slane %v1491, 6
    %v1498 = vsel %vm170, %v1488, %v1493
    %v1499 = vsel %vm172, %v1498, %v1496
    %v1500 = vsel %vm174, %v1499, 0.0
    %s1501 = scalar_lea.vmem %s10, 32
    %1502 = vst [vmem:[%s1501] sm:$0xff] %v1500
    %s1503 = scalar_lea.vmem [#allocation2], 5
    %v1504 = vld [vmem:[%s1503] ss:$8 sm:$0x3]
    %1505 = vmatpush.msra.mxu0 0.0
    %1506 = vmatpush.msra.mxu0 0.0
    %1507 = vmatpush.msra.mxu0 0.0
    %1508 = vmatpush.msra.mxu0 0.0
    %1509 = vmatpush.msra.mxu0 0.0
    %1510 = vmatpush.msra.mxu0 0.0
    %1511 = vmatpush.msra.mxu0 0.0
    %1512 = vmatpush.msra.mxu0 0.0
    %1513 = vmatpush.msra.mxu0 0.0
    %1514 = vmatpush.msra.mxu0 0.0
    %1515 = vmatpush.msra.mxu0 0.0
    %1516 = vmatpush.msra.mxu0 0.0
    %1517 = vmatpush.msra.mxu0 %v270
    %1518 = vmatpush.msra.mxu0 %v268
    %1519 = vmatpush.msra.mxu0 %v266
    %1520 = vmatpush.msra.mxu0 %v264
    %1521 = vmatmul.f32.gmra.mxu0 %v1453
    %v1522 = vpop.f32.mrf.mxu0
    %v1523 = vadd.f32 0.0, %v1522
    %1524 = vdwg.mxu0
    %1525 = vmatpush.msra.mxu0 0.0
    %1526 = vmatpush.msra.mxu0 0.0
    %1527 = vmatpush.msra.mxu0 0.0
    %1528 = vmatpush.msra.mxu0 0.0
    %1529 = vmatpush.msra.mxu0 0.0
    %1530 = vmatpush.msra.mxu0 0.0
    %1531 = vmatpush.msra.mxu0 0.0
    %1532 = vmatpush.msra.mxu0 0.0
    %1533 = vmatpush.msra.mxu0 0.0
    %1534 = vmatpush.msra.mxu0 0.0
    %1535 = vmatpush.msra.mxu0 0.0
    %1536 = vmatpush.msra.mxu0 0.0
    %1537 = vmatpush.msra.mxu0 %v271
    %1538 = vmatpush.msra.mxu0 %v269
    %1539 = vmatpush.msra.mxu0 %v267
    %1540 = vmatpush.msra.mxu0 %v265
    %1541 = vmatmul.f32.gmra.mxu0 %v1453
    %v1542 = vpop.f32.mrf.mxu0
    %v1543 = vadd.f32 0.0, %v1542
    %1544 = vdwg.mxu0
    %v1545 = vadd.f32 %v1504, %v1523
    %v1546 = vadd.f32 %v1545, %v261
    %v1547 = vsel %vm331, %v1546, -inf
    %1548 = vmax.xlane.f32.xlu0 %v1547
    %v1549 = vpop.xlane.xlu0 %1548
    %v1550 = vsub.f32 %v1546, %v1549
    %v1551 = vmul.f32 %v1550, 1.442695
    %v1552 = vpow.pop %v1551
    %v1553 = vsel %vm331, %v1552, 0.0
    %1554 = vadd.xlane.f32.xlu0 %v1553
    %v1555 = vpop.xlane.xlu0 %1554
    %v1556 = vrcp.pop %v1555
    %v1557 = vmul.f32 %v1555, %v1556
    %v1558 = vsub.f32 1.0, %v1557
    %v1559 = vmul.f32 %v1556, %v1558
    %v1560 = vadd.f32 %v1556, %v1559
    %vm1561 = vweird.f32 %v1555
    %vm1562 = vweird.f32 %v1556
    %vm1563 = vmor %vm1561, %vm1562
    %v1564 = vsel %vm1563, %v1556, %v1560
    %v1565 = vand.u32 2147483647, %v1555
    %vm1566 = vcmp.eq.f32.partialorder %v1565, 8.507059e+37
    %v1567 = vand.u32 %v1555, 2147483648
    %v1568 = vor.u32 1.1754944e-38, %v1567
    %v1569 = vsel %vm1566, %v1568, %v1564
    %v1570 = vmul.f32 %v1552, %v1569
    %v1572 = vsel %vm356, %v1570, 0
    %1574 = vmatpush.msra.mxu0 0.0
    %1575 = vmatpush.msra.mxu0 0.0
    %1576 = vmatpush.msra.mxu0 0.0
    %1577 = vmatpush.msra.mxu0 0.0
    %1578 = vmatpush.msra.mxu0 0.0
    %1579 = vmatpush.msra.mxu0 0.0
    %1580 = vmatpush.msra.mxu0 0.0
    %1581 = vmatpush.msra.mxu0 0.0
    %1582 = vmatpush.msra.mxu0 0.0
    %1583 = vmatpush.msra.mxu0 0.0
    %1584 = vmatpush.msra.mxu0 0.0
    %1585 = vmatpush.msra.mxu0 0.0
    %1586 = vmatpush.msra.mxu0 0.0
    %1587 = vmatpush.msra.mxu0 0.0
    %1588 = vmatpush.msra.mxu0 %v361
    %1589 = vmatpush.msra.mxu0 %v262
    %1590 = vmatmul.f32.gmra.mxu0 %v1572
    %v1591 = vpop.f32.mrf.mxu0
    %v1592 = vadd.f32 0.0, %v1591
    %1593 = vdwg.mxu0
    %v1595 = vsel %vm215, %v1592, 0
    %1597 = vmatpush.msra.mxu0 0.0
    %1598 = vmatpush.msra.mxu0 0.0
    %1599 = vmatpush.msra.mxu0 0.0
    %1600 = vmatpush.msra.mxu0 0.0
    %1601 = vmatpush.msra.mxu0 0.0
    %1602 = vmatpush.msra.mxu0 0.0
    %1603 = vmatpush.msra.mxu0 0.0
    %1604 = vmatpush.msra.mxu0 0.0
    %1605 = vmatpush.msra.mxu0 0.0
    %1606 = vmatpush.msra.mxu0 0.0
    %1607 = vmatpush.msra.mxu0 0.0
    %1608 = vmatpush.msra.mxu0 0.0
    %1609 = vmatpush.msra.mxu0 %v275
    %1610 = vmatpush.msra.mxu0 %v274
    %1611 = vmatpush.msra.mxu0 %v273
    %1612 = vmatpush.msra.mxu0 %v272
    %1613 = vmatmul.f32.gmra.mxu0 %v1595
    %v1614 = vpop.f32.mrf.mxu0
    %v1615 = vadd.f32 0.0, %v1614
    %1616 = vdwg.mxu0
    %v1618 = vrot.slane %v1504, 1
    %v1620 = vadd.f32 %v1618, %v1615
    %1621 = vst [vmem:[#allocation1] sm:$0xff] %v261
    %s1622 = scalar_lea.vmem [#allocation1], 1
    %v1623 = vld [vmem:[%s1622] ss:$9 sm:$0xff]
    %v1625 = vadd.f32 %v1620, %v1623
    %v1626 = vmax.f32 %v1625, 0.0
    %v1628 = vsel %vm215, %v1626, 0
    %1630 = vmatpush.msra.mxu0 0.0
    %1631 = vmatpush.msra.mxu0 0.0
    %1632 = vmatpush.msra.mxu0 0.0
    %1633 = vmatpush.msra.mxu0 0.0
    %1634 = vmatpush.msra.mxu0 0.0
    %1635 = vmatpush.msra.mxu0 0.0
    %1636 = vmatpush.msra.mxu0 0.0
    %1637 = vmatpush.msra.mxu0 0.0
    %1638 = vmatpush.msra.mxu0 0.0
    %1639 = vmatpush.msra.mxu0 0.0
    %1640 = vmatpush.msra.mxu0 0.0
    %1641 = vmatpush.msra.mxu0 0.0
    %1642 = vmatpush.msra.mxu0 %v279
    %1643 = vmatpush.msra.mxu0 %v278
    %1644 = vmatpush.msra.mxu0 %v277
    %1645 = vmatpush.msra.mxu0 %v276
    %1646 = vmatmul.f32.gmra.mxu0 %v1628
    %v1647 = vpop.f32.mrf.mxu0
    %v1648 = vadd.f32 %v417, %v1647
    %1649 = vdwg.mxu0
    %v1650 = vadd.f32 %v1543, %v442
    %v1651 = vadd.f32 %v1648, %v1650
    %v1652 = vxor.u32 %v1651, 2147483648
    %v1653 = vmul.f32 %v1652, 1.442695
    %v1654 = vpow.pop %v1653
    %v1655 = vadd.f32 %v1654, 1.0
    %v1656 = vrcp.pop %v1655
    %v1657 = vmul.f32 %v1655, %v1656
    %v1658 = vsub.f32 1.0, %v1657
    %v1659 = vmul.f32 %v1656, %v1658
    %v1660 = vadd.f32 %v1656, %v1659
    %vm1661 = vweird.f32 %v1655
    %vm1662 = vweird.f32 %v1656
    %vm1663 = vmor %vm1661, %vm1662
    %v1664 = vsel %vm1663, %v1656, %v1660
    %v1665 = vand.u32 2147483647, %v1655
    %vm1666 = vcmp.eq.f32.partialorder %v1665, 8.507059e+37
    %v1667 = vand.u32 %v1655, 2147483648
    %v1668 = vor.u32 1.1754944e-38, %v1667
    %v1669 = vsel %vm1666, %v1668, %v1664
    %v1670 = vmul.f32 1.0, %v1669
    %1672 = vrot.lane.b32.xlu0 %v1650, 64
    %v1673 = vpop.permute.xlu0 %1672
    %v1675 = vmul.f32 %v1670, %v1673
    %1677 = vrot.lane.b32.xlu0 %v1675, 64
    %v1678 = vpop.permute.xlu0 %1677
    %v1680 = vadd.f32 %v1648, %v1678
    %v1681 = vtanh.pop %v1680
    %v1682 = vsub.f32 1.0, %v1670
    %1684 = vrot.lane.b32.xlu0 %v1681, 96
    %v1685 = vpop.permute.xlu0 %1684
    %v1687 = vmul.f32 %v1682, %v1685
    %v1688 = vmul.f32 %v1670, %v1449
    %v1689 = vadd.f32 %v1687, %v1688
    %1691 = vrot.lane.b32.xlu0 %v1689, 96
    %v1692 = vpop.permute.xlu0 %1691
    %v1693 = vsel %vm215, %v1692, 0
    %1695 = vmatpush.msra.mxu0 0.0
    %1696 = vmatpush.msra.mxu0 0.0
    %1697 = vmatpush.msra.mxu0 0.0
    %1698 = vmatpush.msra.mxu0 0.0
    %1699 = vmatpush.msra.mxu0 0.0
    %1700 = vmatpush.msra.mxu0 0.0
    %1701 = vmatpush.msra.mxu0 0.0
    %1702 = vmatpush.msra.mxu0 0.0
    %1703 = vmatpush.msra.mxu0 0.0
    %1704 = vmatpush.msra.mxu0 0.0
    %1705 = vmatpush.msra.mxu0 0.0
    %1706 = vmatpush.msra.mxu0 0.0
    %1707 = vmatpush.msra.mxu0 %v283
    %1708 = vmatpush.msra.mxu0 %v282
    %1709 = vmatpush.msra.mxu0 %v281
    %1710 = vmatpush.msra.mxu0 %v280
    %1711 = vmatmul.f32.gmra.mxu0 %v1693
    %v1712 = vpop.f32.mrf.mxu0
    %v1713 = vadd.f32 %v491, %v1712
    %1714 = vdwg.mxu0
    %v1715 = vsel %vm515, %v1713, -inf
    %1716 = vmax.xlane.f32.xlu0 %v1715
    %v1717 = vpop.xlane.xlu0 %1716
    %v1718 = vsub.f32 %v1713, %v1717
    %v1719 = vmul.f32 %v1718, 1.442695
    %v1720 = vpow.pop %v1719
    %v1721 = vsel %vm515, %v1720, 0.0
    %1722 = vadd.xlane.f32.xlu0 %v1721
    %v1723 = vpop.xlane.xlu0 %1722
    %v1724 = vlog2.pop %v1723
    %v1725 = vmul.f32 %v1724, 0.6931472
    %v1726 = vadd.f32 %v1725, %v1717
    %v1727 = vsub.f32 %v1713, %v1726
    %v1728 = vsel %vm183, %v1727, 0.0
    %v1730 = vsel %vm215, %v1692, 0.0
    %v1731 = vsel %vm356, %v1570, 0.0
    %v1733 = vrot.slane %v1730, 7
    %v1736 = vrot.slane %v1731, 6
    %v1738 = vsel %vm170, %v1728, %v1733
    %v1739 = vsel %vm172, %v1738, %v1736
    %v1740 = vsel %vm174, %v1739, 0.0
    %s1741 = scalar_lea.vmem %s10, 40
    %1742 = vst [vmem:[%s1741] sm:$0xff] %v1740
    // Predicated region
    $region70: #{attn_decoder_decode.1} parent=1 // pred_check
      _
    $region71: #{attn_decoder_decode.1} parent=1 // pred_check_branch
      %1744 = sbr.rel (0) target = $region73
    $region72: #{attn_decoder_decode.1} parent=1 // pred_region
      _
    $region73: #{attn_decoder_decode.1} parent=1 // pred_fallthru
      _
    // Predicated region
    $region74: #{attn_decoder_decode.1} parent=1 // pred_check
      _
    $region75: #{attn_decoder_decode.1} parent=1 // pred_check_branch
      %1746 = sbr.rel (0) target = $region77
    $region76: #{attn_decoder_decode.1} parent=1 // pred_region
      _
    $region77: #{attn_decoder_decode.1} parent=1 // pred_fallthru
      _
    %1747 = vsyncpa [#allocation4], 1
    %1748 = vsyncpa [#allocation8], 1
    %1749 = vsyncpa [#allocation11], 1
    %1750 = vsyncpa [#allocation14], 1
    %1751 = vsyncpa [#allocation5], 1

</llo_original>
